<compile_context>
chip_gen: v7x
topology: tpu7x:2x2x1
jax: 0.10.0
libtpu: 0.0.40
codegen_flags: <defaults>
</compile_context>

<pallas_src>
import functools

import numpy as np
import jax
import jax.numpy as jnp
from jax.experimental import pallas as pl
from jax.experimental.pallas import tpu as pltpu


def _decoder_kernel(seq_ref,      # [T*B, D_in]   bf16  time-major padded inputs
                    wix_ref,      # [D_in, 6H]    bf16  input_linearity (x part), gate-reordered
                    wst_ref,      # [H, 6H]       bf16  state_linearity, gate-reordered, raw group = 0
                    b_ref,        # [1, 6H]       f32   b_in + b_state (reordered / padded)
                    wout_ref,     # [H, C_PAD]    bf16  classifier weight (lane padded)
                    bout_ref,     # [1, C_PAD]    f32   classifier bias (-1e30 on pad lanes)
                    wemb_ref,     # [N_EMB_PAD,6H]f32   emb @ W_in_e (gate-reordered); row 0 = 'start'
                    dists_ref,    # [T*B, C_PAD]  f32   output
                    *, T, B, H, n_emb):
    f32, bf16 = jnp.float32, jnp.bfloat16
    c_pad = dists_ref.shape[1]

    w_st = wst_ref[...]            # bf16
    w_out = wout_ref[...]          # bf16
    b_out = bout_ref[...]          # f32
    wemb = wemb_ref[...]           # f32

    # Hoisted, state-independent projection of ALL rows at once:
    #   x @ W_in_x + (b_in + b_state_pad)   (one batched bf16 MXU matmul, f32 acc).
    pix_all = (jnp.dot(seq_ref[...], wix_ref[...], preferred_element_type=f32)
               + b_ref[...])                                     # [T*B, 6H]

    # Carried recurrent values (registers — single invocation, small static unroll).
    memory = jnp.zeros((B, H), f32)
    ps = jnp.zeros((B, 6 * H), f32)                              # state @ W_state (zero init state)
    oh_term = jnp.broadcast_to(wemb[0:1, :], (B, 6 * H))         # pre-projected 'start' embedding

    col = jax.lax.broadcasted_iota(jnp.int32, (B, c_pad), 1)     # hoisted

    # TODO(synk): switch to lax.fori_loop + small VMEM scratch if T/H grow past
    # toy size (vreg live-range / compile-time guard); at T=4, H=32 a static
    # unroll is optimal.
    for t in range(T):
        # Gate pre-activations; columns reordered to [ig | fg | og | hg | mi | raw].
        gates = pix_all[t * B:(t + 1) * B, :] + ps + oh_term     # [B, 6H]

        sig = jax.nn.sigmoid(gates[:, :4 * H])                   # ONE full 128-lane EUP slab
        mi = jnp.tanh(gates[:, 4 * H:5 * H])
        memory = sig[:, 0:H] * mi + sig[:, H:2 * H] * memory
        out = sig[:, 2 * H:3 * H] * jnp.tanh(memory)
        hg = sig[:, 3 * H:4 * H]
        out = hg * out + (1.0 - hg) * gates[:, 5 * H:]

        out_b16 = out.astype(bf16)
        # Next step's recurrent projection issued immediately — it only depends
        # on `out`, so it overlaps the classifier -> argmax -> select chain.
        ps = jnp.dot(out_b16, w_st, preferred_element_type=f32)            # [B, 6H]

        # Classifier, lane-dense [B, C_PAD] (padded classes carry -1e30 bias).
        pred = jnp.dot(out_b16, w_out, preferred_element_type=f32) + b_out

        # First-max argmax over classes (matches torch.max / jnp.argmax).
        max_val = jnp.max(pred, axis=1, keepdims=True)
        idx = jnp.min(jnp.where(pred == max_val, col, c_pad),
                      axis=1, keepdims=True)                      # [B, 1] int32

        # Exact row-select of the pre-projected embedding table (pure VPU
        # selects — no MXU push/drain and no bf16 re-rounding on the serial path).
        idxp1 = idx + 1                                           # +1: row 0 is 'start'
        nxt = jnp.zeros((B, 6 * H), f32)
        for j in range(1, n_emb):                                 # static, tiny table
            nxt = jnp.where(idxp1 == j, wemb[j:j + 1, :], nxt)
        oh_term = nxt

        # Aligned, full-width (128-lane) f32 store.
        dists_ref[t * B:(t + 1) * B, :] = pred


def decoder_rnn_forward(sequence_tensor, batch_lengths, params):
    """Pallas implementation of DecoderRNN.forward on a packed sequence."""
    w_in, b_in, w_st, b_st, w_out, b_out, emb = params
    total, d_in = sequence_tensor.shape
    h = w_st.shape[0]
    c = w_out.shape[1]
    n_emb = emb.shape[0]
    lengths = [int(l) for l in batch_lengths]
    T = len(lengths)
    B = lengths[0]
    assert sum(lengths) == total
    # PackedSequence invariant the carried state relies on (inactive rows never
    # re-activate and are never emitted).
    assert all(lengths[i] >= lengths[i + 1] for i in range(T - 1)), \
        "packed batch lengths must be non-increasing"

    BP = ((B + 7) // 8) * 8                       # sublane-aligned batch tile
    C_PAD = ((c + 127) // 128) * 128              # lane-dense classifier width
    N_EMB_PAD = ((n_emb + 7) // 8) * 8

    bf16, f32 = jnp.bfloat16, jnp.float32

    # ---- static weight repacking (once per compile) -------------------------
    def reorder(wb, groups):
        return jnp.concatenate([wb[..., g * h:(g + 1) * h] for g in groups], axis=-1)

    # original gate order [ig, fg, mi, og, hg, raw] -> [ig, fg, og, hg, mi, raw]
    perm6 = (0, 1, 3, 4, 2, 5)
    perm5 = (0, 1, 3, 4, 2)

    w_in_r = reorder(w_in, perm6)                                     # [d_in+E, 6H]
    b_in_r = reorder(b_in, perm6)                                     # [1, 6H]
    w_st_r = jnp.pad(reorder(w_st, perm5), ((0, 0), (0, h)))          # [H, 6H] raw group = 0
    b_st_r = jnp.pad(reorder(b_st, perm5), ((0, 0), (0, h)))          # [1, 6H]

    w_in_x = w_in_r[:d_in].astype(bf16)                               # [d_in, 6H]
    w_in_e = w_in_r[d_in:]                                            # [E, 6H]
    b_all = (b_in_r + b_st_r).astype(f32)                             # [1, 6H]
    w_st_b = w_st_r.astype(bf16)                                      # [H, 6H]
    w_out_b = jnp.pad(w_out, ((0, 0), (0, C_PAD - c))).astype(bf16)   # [H, C_PAD]
    b_out_p = jnp.pad(b_out, ((0, 0), (0, C_PAD - c)),
                      constant_values=-1e30).astype(f32)              # pad classes never win

    # Fold the embedding table through the input linearity once:
    #   wemb[k] = emb[k] @ W_in_e  (kept f32 so the in-kernel row select is exact).
    emb_p = jnp.pad(emb, ((0, N_EMB_PAD - n_emb), (0, 0)))
    wemb = jnp.dot(emb_p.astype(bf16), w_in_e.astype(bf16),
                   preferred_element_type=f32)                        # [N_EMB_PAD, 6H]

    # ---- packed -> aligned time-major [T*BP, d_in] (single static gather) ----
    gather_idx = np.full((T * BP,), total, dtype=np.int32)            # pads -> zero row
    off = 0
    for t, l in enumerate(lengths):
        gather_idx[t * BP:t * BP + l] = np.arange(off, off + l)
        off += l
    seq_ext = jnp.concatenate(
        [sequence_tensor, jnp.zeros((1, d_in), sequence_tensor.dtype)], axis=0)
    seq_tb = seq_ext[jnp.asarray(gather_idx)].astype(bf16)            # [T*BP, d_in]

    kernel = functools.partial(_decoder_kernel, T=T, B=BP, H=h, n_emb=n_emb)

    def vmem():
        return pl.BlockSpec(memory_space=pltpu.MemorySpace.VMEM)

    dists_tb = pl.pallas_call(
        kernel,
        out_shape=jax.ShapeDtypeStruct((T * BP, C_PAD), f32),
        in_specs=[vmem() for _ in range(7)],
        out_specs=vmem(),
    )(seq_tb, w_in_x, w_st_b, b_all, w_out_b, b_out_p, wemb)

    # ---- aligned time-major -> packed (single static gather) ----------------
    scatter_idx = np.concatenate(
        [np.arange(t * BP, t * BP + l) for t, l in enumerate(lengths)]).astype(np.int32)
    dists = dists_tb[jnp.asarray(scatter_idx), :c]                    # pad cols (-1e30) dropped here
    commits = jnp.argmax(dists, axis=1).astype(jnp.int32)             # same first-max semantics
    return dists, commits


def reference_forward(sequence_tensor, batch_lengths, params):
    """Pure-JAX port of the original torch forward (pi/ps structure, original
    gate order, real embedding lookup) with bf16-operand / f32-accumulation
    matmuls matching the kernel's MXU numerics."""
    w_in, b_in, w_st, b_st, w_out, b_out, emb = params

    def mm(a, b):
        return jnp.dot(a.astype(jnp.bfloat16), b.astype(jnp.bfloat16),
                       preferred_element_type=jnp.float32)

    H = w_st.shape[0]
    E = emb.shape[1]
    B = int(batch_lengths[0])
    state = jnp.zeros((B, H), jnp.float32)
    mem = jnp.zeros((B, H), jnp.float32)
    prev_emb = jnp.broadcast_to(emb[0:1], (B, E))
    dists, commits = [], []
    end = 0
    for l in batch_lengths:
        l = int(l)
        start, end = end, end + l
        state, mem, prev_emb = state[:l], mem[:l], prev_emb[:l]
        ti = jnp.concatenate([sequence_tensor[start:end], prev_emb], axis=1)
        pi = mm(ti, w_in) + b_in
        ps = mm(state, w_st) + b_st
        ig = jax.nn.sigmoid(pi[:, 0 * H:1 * H] + ps[:, 0 * H:1 * H])
        fg = jax.nn.sigmoid(pi[:, 1 * H:2 * H] + ps[:, 1 * H:2 * H])
        mi = jnp.tanh(pi[:, 2 * H:3 * H] + ps[:, 2 * H:3 * H])
        og = jax.nn.sigmoid(pi[:, 3 * H:4 * H] + ps[:, 3 * H:4 * H])
        mem = ig * mi + fg * mem
        out = og * jnp.tanh(mem)
        hg = jax.nn.sigmoid(pi[:, 4 * H:5 * H] + ps[:, 4 * H:5 * H])
        out = hg * out + (1.0 - hg) * pi[:, 5 * H:6 * H]
        pred = mm(out, w_out) + b_out
        idx = jnp.argmax(pred, axis=1).astype(jnp.int32)
        dists.append(pred)
        commits.append(idx)
        prev_emb = emb[idx + 1]
        state = out
    return jnp.concatenate(dists, 0), jnp.concatenate(commits, 0)


if __name__ == "__main__":
    # Small shapes consistent with the module's __init__:
    #   inputs_dim=32, embed_dim=16, hidden_dim=32, 10 obj classes.
    D_IN, E, H, C = 32, 16, 32, 10
    batch_lengths = [8, 8, 6, 4]            # PackedSequence batch sizes (non-increasing)
    total = sum(batch_lengths)

    key = jax.random.PRNGKey(0)
    ks = jax.random.split(key, 8)
    seq = jax.random.normal(ks[0], (total, D_IN), jnp.float32)

    # Deterministic synthetic parameters (no GloVe / checkpoint loading).
    w_in = jax.random.normal(ks[1], (D_IN + E, 6 * H), jnp.float32) * 0.1
    b_in = jnp.zeros((1, 6 * H), jnp.float32)               # init_parameters: bias = 0
    w_st = jax.random.normal(ks[2], (H, 5 * H), jnp.float32) * 0.1
    b_st = jnp.zeros((1, 5 * H), jnp.float32)               # init_parameters: bias = 0
    w_out = jax.random.normal(ks[3], (H, C), jnp.float32) * 0.3
    b_out = jax.random.normal(ks[4], (1, C), jnp.float32) * 0.1
    emb = jax.random.normal(ks[5], (C + 1, E), jnp.float32) * 0.5  # ['start'] + obj_classes
    params = (w_in, b_in, w_st, b_st, w_out, b_out, emb)

    # TODO(synk): rnn_drop dropout mask (training-only) and the unused labels /
    # boxes_for_nms arguments (no NMS branch in this forward) are omitted.

    dists, commits = decoder_rnn_forward(seq, batch_lengths, params)
    jax.block_until_ready((dists, commits))

    ref_d, ref_c = reference_forward(seq, batch_lengths, params)
    assert dists.shape == (total, C) and commits.shape == (total,)
    np.testing.assert_allclose(np.asarray(dists), np.asarray(ref_d),
                               rtol=5e-3, atol=5e-3)
    np.testing.assert_array_equal(np.asarray(commits), np.asarray(ref_c))
    print("KERNEL_OK")
</pallas_src>

<mosaic_0001>
module attributes {stable_mosaic.version = 11 : i64} {
  func.func @_decoder_kernel(%arg0: memref<32x32xbf16, #tpu.memory_space<vmem>>, %arg1: memref<32x192xbf16, #tpu.memory_space<vmem>>, %arg2: memref<32x192xbf16, #tpu.memory_space<vmem>>, %arg3: memref<1x192xf32, #tpu.memory_space<vmem>>, %arg4: memref<32x128xbf16, #tpu.memory_space<vmem>>, %arg5: memref<1x128xf32, #tpu.memory_space<vmem>>, %arg6: memref<16x192xf32, #tpu.memory_space<vmem>>, %arg7: memref<32x128xf32, #tpu.memory_space<vmem>>) attributes {dimension_semantics = [], scalar_prefetch = 0 : i64, scratch_operands = 0 : i64, tpu.core_type = #tpu.core_type<tc>} {
    %c0 = arith.constant 0 : index
    %c0_0 = arith.constant 0 : index
    %0 = vector.load %arg2[%c0, %c0_0] : memref<32x192xbf16, #tpu.memory_space<vmem>>, vector<32x192xbf16>
    %c0_1 = arith.constant 0 : index
    %c0_2 = arith.constant 0 : index
    %1 = vector.load %arg4[%c0_1, %c0_2] : memref<32x128xbf16, #tpu.memory_space<vmem>>, vector<32x128xbf16>
    %c0_3 = arith.constant 0 : index
    %c0_4 = arith.constant 0 : index
    %2 = vector.load %arg5[%c0_3, %c0_4] : memref<1x128xf32, #tpu.memory_space<vmem>>, vector<1x128xf32>
    %c0_5 = arith.constant 0 : index
    %c0_6 = arith.constant 0 : index
    %3 = vector.load %arg6[%c0_5, %c0_6] : memref<16x192xf32, #tpu.memory_space<vmem>>, vector<16x192xf32>
    %c0_7 = arith.constant 0 : index
    %c0_8 = arith.constant 0 : index
    %4 = vector.load %arg0[%c0_7, %c0_8] : memref<32x32xbf16, #tpu.memory_space<vmem>>, vector<32x32xbf16>
    %c0_9 = arith.constant 0 : index
    %c0_10 = arith.constant 0 : index
    %5 = vector.load %arg1[%c0_9, %c0_10] : memref<32x192xbf16, #tpu.memory_space<vmem>>, vector<32x192xbf16>
    %cst = arith.constant dense<0.000000e+00> : vector<32x192xf32>
    %6 = tpu.matmul %4, %5, %cst {dimension_numbers = #tpu.dot_dimension_numbers<[1], [0], [0], [1], [0, 0, 1, 1], [], []>} : vector<32x32xbf16>, vector<32x192xbf16>, vector<32x192xf32> -> vector<32x192xf32>
    %c0_11 = arith.constant 0 : index
    %c0_12 = arith.constant 0 : index
    %7 = vector.load %arg3[%c0_11, %c0_12] : memref<1x192xf32, #tpu.memory_space<vmem>>, vector<1x192xf32>
    %8 = vector.broadcast %7 : vector<1x192xf32> to vector<32x192xf32>
    %9 = arith.addf %6, %8 : vector<32x192xf32>
    %cst_13 = arith.constant 0.000000e+00 : f32
    %10 = vector.broadcast %cst_13 : f32 to vector<8x32xf32>
    %cst_14 = arith.constant 0.000000e+00 : f32
    %11 = vector.broadcast %cst_14 : f32 to vector<8x192xf32>
    %12 = vector.extract_strided_slice %3 {offsets = [0, 0], sizes = [1, 192], strides = [1, 1]} : vector<16x192xf32> to vector<1x192xf32>
    %13 = vector.shape_cast %12 : vector<1x192xf32> to vector<1x192xf32>
    %14 = vector.broadcast %13 : vector<1x192xf32> to vector<8x192xf32>
    %15 = tpu.iota {dimensions = array<i32: 1>} : vector<8x128xi32>
    %16 = vector.extract_strided_slice %9 {offsets = [0, 0], sizes = [8, 192], strides = [1, 1]} : vector<32x192xf32> to vector<8x192xf32>
    %17 = arith.addf %16, %11 : vector<8x192xf32>
    %18 = arith.addf %17, %14 : vector<8x192xf32>
    %19 = vector.extract_strided_slice %18 {offsets = [0, 0], sizes = [8, 128], strides = [1, 1]} : vector<8x192xf32> to vector<8x128xf32>
    %20 = arith.negf %19 : vector<8x128xf32>
    %21 = math.exp %20 : vector<8x128xf32>
    %cst_15 = arith.constant 1.000000e+00 : f32
    %22 = vector.broadcast %cst_15 : f32 to vector<8x128xf32>
    %23 = arith.addf %22, %21 : vector<8x128xf32>
    %24 = arith.divf %22, %23 : vector<8x128xf32>
    %25 = vector.extract_strided_slice %18 {offsets = [0, 128], sizes = [8, 32], strides = [1, 1]} : vector<8x192xf32> to vector<8x32xf32>
    %26 = math.tanh %25 : vector<8x32xf32>
    %27 = vector.extract_strided_slice %24 {offsets = [0, 0], sizes = [8, 32], strides = [1, 1]} : vector<8x128xf32> to vector<8x32xf32>
    %28 = arith.mulf %27, %26 : vector<8x32xf32>
    %29 = vector.extract_strided_slice %24 {offsets = [0, 32], sizes = [8, 32], strides = [1, 1]} : vector<8x128xf32> to vector<8x32xf32>
    %30 = arith.mulf %29, %10 : vector<8x32xf32>
    %31 = arith.addf %28, %30 : vector<8x32xf32>
    %32 = vector.extract_strided_slice %24 {offsets = [0, 64], sizes = [8, 32], strides = [1, 1]} : vector<8x128xf32> to vector<8x32xf32>
    %33 = math.tanh %31 : vector<8x32xf32>
    %34 = arith.mulf %32, %33 : vector<8x32xf32>
    %35 = vector.extract_strided_slice %24 {offsets = [0, 96], sizes = [8, 32], strides = [1, 1]} : vector<8x128xf32> to vector<8x32xf32>
    %36 = arith.mulf %35, %34 : vector<8x32xf32>
    %cst_16 = arith.constant 1.000000e+00 : f32
    %37 = vector.broadcast %cst_16 : f32 to vector<8x32xf32>
    %38 = arith.subf %37, %35 : vector<8x32xf32>
    %39 = vector.extract_strided_slice %18 {offsets = [0, 160], sizes = [8, 32], strides = [1, 1]} : vector<8x192xf32> to vector<8x32xf32>
    %40 = arith.mulf %38, %39 : vector<8x32xf32>
    %41 = arith.addf %36, %40 : vector<8x32xf32>
    %42 = arith.truncf %41 : vector<8x32xf32> to vector<8x32xbf16>
    %cst_17 = arith.constant dense<0.000000e+00> : vector<8x192xf32>
    %43 = tpu.matmul %42, %0, %cst_17 {dimension_numbers = #tpu.dot_dimension_numbers<[1], [0], [0], [1], [0, 0, 1, 1], [], []>} : vector<8x32xbf16>, vector<32x192xbf16>, vector<8x192xf32> -> vector<8x192xf32>
    %cst_18 = arith.constant dense<0.000000e+00> : vector<8x128xf32>
    %44 = tpu.matmul %42, %1, %cst_18 {dimension_numbers = #tpu.dot_dimension_numbers<[1], [0], [0], [1], [0, 0, 1, 1], [], []>} : vector<8x32xbf16>, vector<32x128xbf16>, vector<8x128xf32> -> vector<8x128xf32>
    %45 = vector.broadcast %2 : vector<1x128xf32> to vector<8x128xf32>
    %46 = arith.addf %44, %45 : vector<8x128xf32>
    %cst_19 = arith.constant dense<0xFF800000> : vector<8xf32>
    %47 = vector.multi_reduction <maximumf>, %46, %cst_19 [1] : vector<8x128xf32> to vector<8xf32>
    %48 = vector.shape_cast %47 : vector<8xf32> to vector<8x1xf32>
    %49 = vector.broadcast %48 : vector<8x1xf32> to vector<8x128xf32>
    %50 = arith.cmpf oeq, %46, %49 : vector<8x128xf32>
    %c128_i32 = arith.constant 128 : i32
    %51 = vector.broadcast %c128_i32 : i32 to vector<8x128xi32>
    %52 = arith.select %50, %15, %51 : vector<8x128xi1>, vector<8x128xi32>
    %cst_20 = arith.constant dense<2147483647> : vector<8xi32>
    %53 = vector.multi_reduction <minsi>, %52, %cst_20 [1] : vector<8x128xi32> to vector<8xi32>
    %54 = vector.shape_cast %53 : vector<8xi32> to vector<8x1xi32>
    %c1_i32 = arith.constant 1 : i32
    %55 = vector.broadcast %c1_i32 : i32 to vector<8x1xi32>
    %56 = arith.addi %54, %55 : vector<8x1xi32>
    %cst_21 = arith.constant 0.000000e+00 : f32
    %57 = vector.broadcast %cst_21 : f32 to vector<8x192xf32>
    %c1_i32_22 = arith.constant 1 : i32
    %58 = vector.broadcast %c1_i32_22 : i32 to vector<8x1xi32>
    %59 = arith.cmpi eq, %56, %58 : vector<8x1xi32>
    %60 = vector.extract_strided_slice %3 {offsets = [1, 0], sizes = [1, 192], strides = [1, 1]} : vector<16x192xf32> to vector<1x192xf32>
    %61 = vector.shape_cast %59 : vector<8x1xi1> to vector<8x1xi1>
    %62 = vector.broadcast %61 : vector<8x1xi1> to vector<8x192xi1>
    %63 = vector.shape_cast %60 : vector<1x192xf32> to vector<1x192xf32>
    %64 = vector.broadcast %63 : vector<1x192xf32> to vector<8x192xf32>
    %65 = arith.select %62, %64, %57 : vector<8x192xi1>, vector<8x192xf32>
    %c2_i32 = arith.constant 2 : i32
    %66 = vector.broadcast %c2_i32 : i32 to vector<8x1xi32>
    %67 = arith.cmpi eq, %56, %66 : vector<8x1xi32>
    %68 = vector.extract_strided_slice %3 {offsets = [2, 0], sizes = [1, 192], strides = [1, 1]} : vector<16x192xf32> to vector<1x192xf32>
    %69 = vector.shape_cast %67 : vector<8x1xi1> to vector<8x1xi1>
    %70 = vector.broadcast %69 : vector<8x1xi1> to vector<8x192xi1>
    %71 = vector.shape_cast %68 : vector<1x192xf32> to vector<1x192xf32>
    %72 = vector.broadcast %71 : vector<1x192xf32> to vector<8x192xf32>
    %73 = arith.select %70, %72, %65 : vector<8x192xi1>, vector<8x192xf32>
    %c3_i32 = arith.constant 3 : i32
    %74 = vector.broadcast %c3_i32 : i32 to vector<8x1xi32>
    %75 = arith.cmpi eq, %56, %74 : vector<8x1xi32>
    %76 = vector.extract_strided_slice %3 {offsets = [3, 0], sizes = [1, 192], strides = [1, 1]} : vector<16x192xf32> to vector<1x192xf32>
    %77 = vector.shape_cast %75 : vector<8x1xi1> to vector<8x1xi1>
    %78 = vector.broadcast %77 : vector<8x1xi1> to vector<8x192xi1>
    %79 = vector.shape_cast %76 : vector<1x192xf32> to vector<1x192xf32>
    %80 = vector.broadcast %79 : vector<1x192xf32> to vector<8x192xf32>
    %81 = arith.select %78, %80, %73 : vector<8x192xi1>, vector<8x192xf32>
    %c4_i32 = arith.constant 4 : i32
    %82 = vector.broadcast %c4_i32 : i32 to vector<8x1xi32>
    %83 = arith.cmpi eq, %56, %82 : vector<8x1xi32>
    %84 = vector.extract_strided_slice %3 {offsets = [4, 0], sizes = [1, 192], strides = [1, 1]} : vector<16x192xf32> to vector<1x192xf32>
    %85 = vector.shape_cast %83 : vector<8x1xi1> to vector<8x1xi1>
    %86 = vector.broadcast %85 : vector<8x1xi1> to vector<8x192xi1>
    %87 = vector.shape_cast %84 : vector<1x192xf32> to vector<1x192xf32>
    %88 = vector.broadcast %87 : vector<1x192xf32> to vector<8x192xf32>
    %89 = arith.select %86, %88, %81 : vector<8x192xi1>, vector<8x192xf32>
    %c5_i32 = arith.constant 5 : i32
    %90 = vector.broadcast %c5_i32 : i32 to vector<8x1xi32>
    %91 = arith.cmpi eq, %56, %90 : vector<8x1xi32>
    %92 = vector.extract_strided_slice %3 {offsets = [5, 0], sizes = [1, 192], strides = [1, 1]} : vector<16x192xf32> to vector<1x192xf32>
    %93 = vector.shape_cast %91 : vector<8x1xi1> to vector<8x1xi1>
    %94 = vector.broadcast %93 : vector<8x1xi1> to vector<8x192xi1>
    %95 = vector.shape_cast %92 : vector<1x192xf32> to vector<1x192xf32>
    %96 = vector.broadcast %95 : vector<1x192xf32> to vector<8x192xf32>
    %97 = arith.select %94, %96, %89 : vector<8x192xi1>, vector<8x192xf32>
    %c6_i32 = arith.constant 6 : i32
    %98 = vector.broadcast %c6_i32 : i32 to vector<8x1xi32>
    %99 = arith.cmpi eq, %56, %98 : vector<8x1xi32>
    %100 = vector.extract_strided_slice %3 {offsets = [6, 0], sizes = [1, 192], strides = [1, 1]} : vector<16x192xf32> to vector<1x192xf32>
    %101 = vector.shape_cast %99 : vector<8x1xi1> to vector<8x1xi1>
    %102 = vector.broadcast %101 : vector<8x1xi1> to vector<8x192xi1>
    %103 = vector.shape_cast %100 : vector<1x192xf32> to vector<1x192xf32>
    %104 = vector.broadcast %103 : vector<1x192xf32> to vector<8x192xf32>
    %105 = arith.select %102, %104, %97 : vector<8x192xi1>, vector<8x192xf32>
    %c7_i32 = arith.constant 7 : i32
    %106 = vector.broadcast %c7_i32 : i32 to vector<8x1xi32>
    %107 = arith.cmpi eq, %56, %106 : vector<8x1xi32>
    %108 = vector.extract_strided_slice %3 {offsets = [7, 0], sizes = [1, 192], strides = [1, 1]} : vector<16x192xf32> to vector<1x192xf32>
    %109 = vector.shape_cast %107 : vector<8x1xi1> to vector<8x1xi1>
    %110 = vector.broadcast %109 : vector<8x1xi1> to vector<8x192xi1>
    %111 = vector.shape_cast %108 : vector<1x192xf32> to vector<1x192xf32>
    %112 = vector.broadcast %111 : vector<1x192xf32> to vector<8x192xf32>
    %113 = arith.select %110, %112, %105 : vector<8x192xi1>, vector<8x192xf32>
    %c8_i32 = arith.constant 8 : i32
    %114 = vector.broadcast %c8_i32 : i32 to vector<8x1xi32>
    %115 = arith.cmpi eq, %56, %114 : vector<8x1xi32>
    %116 = vector.extract_strided_slice %3 {offsets = [8, 0], sizes = [1, 192], strides = [1, 1]} : vector<16x192xf32> to vector<1x192xf32>
    %117 = vector.shape_cast %115 : vector<8x1xi1> to vector<8x1xi1>
    %118 = vector.broadcast %117 : vector<8x1xi1> to vector<8x192xi1>
    %119 = vector.shape_cast %116 : vector<1x192xf32> to vector<1x192xf32>
    %120 = vector.broadcast %119 : vector<1x192xf32> to vector<8x192xf32>
    %121 = arith.select %118, %120, %113 : vector<8x192xi1>, vector<8x192xf32>
    %c9_i32 = arith.constant 9 : i32
    %122 = vector.broadcast %c9_i32 : i32 to vector<8x1xi32>
    %123 = arith.cmpi eq, %56, %122 : vector<8x1xi32>
    %124 = vector.extract_strided_slice %3 {offsets = [9, 0], sizes = [1, 192], strides = [1, 1]} : vector<16x192xf32> to vector<1x192xf32>
    %125 = vector.shape_cast %123 : vector<8x1xi1> to vector<8x1xi1>
    %126 = vector.broadcast %125 : vector<8x1xi1> to vector<8x192xi1>
    %127 = vector.shape_cast %124 : vector<1x192xf32> to vector<1x192xf32>
    %128 = vector.broadcast %127 : vector<1x192xf32> to vector<8x192xf32>
    %129 = arith.select %126, %128, %121 : vector<8x192xi1>, vector<8x192xf32>
    %c10_i32 = arith.constant 10 : i32
    %130 = vector.broadcast %c10_i32 : i32 to vector<8x1xi32>
    %131 = arith.cmpi eq, %56, %130 : vector<8x1xi32>
    %132 = vector.extract_strided_slice %3 {offsets = [10, 0], sizes = [1, 192], strides = [1, 1]} : vector<16x192xf32> to vector<1x192xf32>
    %133 = vector.shape_cast %131 : vector<8x1xi1> to vector<8x1xi1>
    %134 = vector.broadcast %133 : vector<8x1xi1> to vector<8x192xi1>
    %135 = vector.shape_cast %132 : vector<1x192xf32> to vector<1x192xf32>
    %136 = vector.broadcast %135 : vector<1x192xf32> to vector<8x192xf32>
    %137 = arith.select %134, %136, %129 : vector<8x192xi1>, vector<8x192xf32>
    %c0_23 = arith.constant 0 : index
    %c0_24 = arith.constant 0 : index
    %138 = vector.load %arg7[%c0_23, %c0_24] : memref<32x128xf32, #tpu.memory_space<vmem>>, vector<8x128xf32>
    tpu.vector_store %arg7[%c0_23, %c0_24], %46 {strides = array<i32>} : memref<32x128xf32, #tpu.memory_space<vmem>>, vector<8x128xf32>,
    %139 = vector.extract_strided_slice %9 {offsets = [8, 0], sizes = [8, 192], strides = [1, 1]} : vector<32x192xf32> to vector<8x192xf32>
    %140 = arith.addf %139, %43 : vector<8x192xf32>
    %141 = arith.addf %140, %137 : vector<8x192xf32>
    %142 = vector.extract_strided_slice %141 {offsets = [0, 0], sizes = [8, 128], strides = [1, 1]} : vector<8x192xf32> to vector<8x128xf32>
    %143 = arith.negf %142 : vector<8x128xf32>
    %144 = math.exp %143 : vector<8x128xf32>
    %cst_25 = arith.constant 1.000000e+00 : f32
    %145 = vector.broadcast %cst_25 : f32 to vector<8x128xf32>
    %146 = arith.addf %145, %144 : vector<8x128xf32>
    %147 = arith.divf %145, %146 : vector<8x128xf32>
    %148 = vector.extract_strided_slice %141 {offsets = [0, 128], sizes = [8, 32], strides = [1, 1]} : vector<8x192xf32> to vector<8x32xf32>
    %149 = math.tanh %148 : vector<8x32xf32>
    %150 = vector.extract_strided_slice %147 {offsets = [0, 0], sizes = [8, 32], strides = [1, 1]} : vector<8x128xf32> to vector<8x32xf32>
    %151 = arith.mulf %150, %149 : vector<8x32xf32>
    %152 = vector.extract_strided_slice %147 {offsets = [0, 32], sizes = [8, 32], strides = [1, 1]} : vector<8x128xf32> to vector<8x32xf32>
    %153 = arith.mulf %152, %31 : vector<8x32xf32>
    %154 = arith.addf %151, %153 : vector<8x32xf32>
    %155 = vector.extract_strided_slice %147 {offsets = [0, 64], sizes = [8, 32], strides = [1, 1]} : vector<8x128xf32> to vector<8x32xf32>
    %156 = math.tanh %154 : vector<8x32xf32>
    %157 = arith.mulf %155, %156 : vector<8x32xf32>
    %158 = vector.extract_strided_slice %147 {offsets = [0, 96], sizes = [8, 32], strides = [1, 1]} : vector<8x128xf32> to vector<8x32xf32>
    %159 = arith.mulf %158, %157 : vector<8x32xf32>
    %cst_26 = arith.constant 1.000000e+00 : f32
    %160 = vector.broadcast %cst_26 : f32 to vector<8x32xf32>
    %161 = arith.subf %160, %158 : vector<8x32xf32>
    %162 = vector.extract_strided_slice %141 {offsets = [0, 160], sizes = [8, 32], strides = [1, 1]} : vector<8x192xf32> to vector<8x32xf32>
    %163 = arith.mulf %161, %162 : vector<8x32xf32>
    %164 = arith.addf %159, %163 : vector<8x32xf32>
    %165 = arith.truncf %164 : vector<8x32xf32> to vector<8x32xbf16>
    %cst_27 = arith.constant dense<0.000000e+00> : vector<8x192xf32>
    %166 = tpu.matmul %165, %0, %cst_27 {dimension_numbers = #tpu.dot_dimension_numbers<[1], [0], [0], [1], [0, 0, 1, 1], [], []>} : vector<8x32xbf16>, vector<32x192xbf16>, vector<8x192xf32> -> vector<8x192xf32>
    %cst_28 = arith.constant dense<0.000000e+00> : vector<8x128xf32>
    %167 = tpu.matmul %165, %1, %cst_28 {dimension_numbers = #tpu.dot_dimension_numbers<[1], [0], [0], [1], [0, 0, 1, 1], [], []>} : vector<8x32xbf16>, vector<32x128xbf16>, vector<8x128xf32> -> vector<8x128xf32>
    %168 = vector.broadcast %2 : vector<1x128xf32> to vector<8x128xf32>
    %169 = arith.addf %167, %168 : vector<8x128xf32>
    %cst_29 = arith.constant dense<0xFF800000> : vector<8xf32>
    %170 = vector.multi_reduction <maximumf>, %169, %cst_29 [1] : vector<8x128xf32> to vector<8xf32>
    %171 = vector.shape_cast %170 : vector<8xf32> to vector<8x1xf32>
    %172 = vector.broadcast %171 : vector<8x1xf32> to vector<8x128xf32>
    %173 = arith.cmpf oeq, %169, %172 : vector<8x128xf32>
    %c128_i32_30 = arith.constant 128 : i32
    %174 = vector.broadcast %c128_i32_30 : i32 to vector<8x128xi32>
    %175 = arith.select %173, %15, %174 : vector<8x128xi1>, vector<8x128xi32>
    %cst_31 = arith.constant dense<2147483647> : vector<8xi32>
    %176 = vector.multi_reduction <minsi>, %175, %cst_31 [1] : vector<8x128xi32> to vector<8xi32>
    %177 = vector.shape_cast %176 : vector<8xi32> to vector<8x1xi32>
    %c1_i32_32 = arith.constant 1 : i32
    %178 = vector.broadcast %c1_i32_32 : i32 to vector<8x1xi32>
    %179 = arith.addi %177, %178 : vector<8x1xi32>
    %cst_33 = arith.constant 0.000000e+00 : f32
    %180 = vector.broadcast %cst_33 : f32 to vector<8x192xf32>
    %c1_i32_34 = arith.constant 1 : i32
    %181 = vector.broadcast %c1_i32_34 : i32 to vector<8x1xi32>
    %182 = arith.cmpi eq, %179, %181 : vector<8x1xi32>
    %183 = vector.extract_strided_slice %3 {offsets = [1, 0], sizes = [1, 192], strides = [1, 1]} : vector<16x192xf32> to vector<1x192xf32>
    %184 = vector.shape_cast %182 : vector<8x1xi1> to vector<8x1xi1>
    %185 = vector.broadcast %184 : vector<8x1xi1> to vector<8x192xi1>
    %186 = vector.shape_cast %183 : vector<1x192xf32> to vector<1x192xf32>
    %187 = vector.broadcast %186 : vector<1x192xf32> to vector<8x192xf32>
    %188 = arith.select %185, %187, %180 : vector<8x192xi1>, vector<8x192xf32>
    %c2_i32_35 = arith.constant 2 : i32
    %189 = vector.broadcast %c2_i32_35 : i32 to vector<8x1xi32>
    %190 = arith.cmpi eq, %179, %189 : vector<8x1xi32>
    %191 = vector.extract_strided_slice %3 {offsets = [2, 0], sizes = [1, 192], strides = [1, 1]} : vector<16x192xf32> to vector<1x192xf32>
    %192 = vector.shape_cast %190 : vector<8x1xi1> to vector<8x1xi1>
    %193 = vector.broadcast %192 : vector<8x1xi1> to vector<8x192xi1>
    %194 = vector.shape_cast %191 : vector<1x192xf32> to vector<1x192xf32>
    %195 = vector.broadcast %194 : vector<1x192xf32> to vector<8x192xf32>
    %196 = arith.select %193, %195, %188 : vector<8x192xi1>, vector<8x192xf32>
    %c3_i32_36 = arith.constant 3 : i32
    %197 = vector.broadcast %c3_i32_36 : i32 to vector<8x1xi32>
    %198 = arith.cmpi eq, %179, %197 : vector<8x1xi32>
    %199 = vector.extract_strided_slice %3 {offsets = [3, 0], sizes = [1, 192], strides = [1, 1]} : vector<16x192xf32> to vector<1x192xf32>
    %200 = vector.shape_cast %198 : vector<8x1xi1> to vector<8x1xi1>
    %201 = vector.broadcast %200 : vector<8x1xi1> to vector<8x192xi1>
    %202 = vector.shape_cast %199 : vector<1x192xf32> to vector<1x192xf32>
    %203 = vector.broadcast %202 : vector<1x192xf32> to vector<8x192xf32>
    %204 = arith.select %201, %203, %196 : vector<8x192xi1>, vector<8x192xf32>
    %c4_i32_37 = arith.constant 4 : i32
    %205 = vector.broadcast %c4_i32_37 : i32 to vector<8x1xi32>
    %206 = arith.cmpi eq, %179, %205 : vector<8x1xi32>
    %207 = vector.extract_strided_slice %3 {offsets = [4, 0], sizes = [1, 192], strides = [1, 1]} : vector<16x192xf32> to vector<1x192xf32>
    %208 = vector.shape_cast %206 : vector<8x1xi1> to vector<8x1xi1>
    %209 = vector.broadcast %208 : vector<8x1xi1> to vector<8x192xi1>
    %210 = vector.shape_cast %207 : vector<1x192xf32> to vector<1x192xf32>
    %211 = vector.broadcast %210 : vector<1x192xf32> to vector<8x192xf32>
    %212 = arith.select %209, %211, %204 : vector<8x192xi1>, vector<8x192xf32>
    %c5_i32_38 = arith.constant 5 : i32
    %213 = vector.broadcast %c5_i32_38 : i32 to vector<8x1xi32>
    %214 = arith.cmpi eq, %179, %213 : vector<8x1xi32>
    %215 = vector.extract_strided_slice %3 {offsets = [5, 0], sizes = [1, 192], strides = [1, 1]} : vector<16x192xf32> to vector<1x192xf32>
    %216 = vector.shape_cast %214 : vector<8x1xi1> to vector<8x1xi1>
    %217 = vector.broadcast %216 : vector<8x1xi1> to vector<8x192xi1>
    %218 = vector.shape_cast %215 : vector<1x192xf32> to vector<1x192xf32>
    %219 = vector.broadcast %218 : vector<1x192xf32> to vector<8x192xf32>
    %220 = arith.select %217, %219, %212 : vector<8x192xi1>, vector<8x192xf32>
    %c6_i32_39 = arith.constant 6 : i32
    %221 = vector.broadcast %c6_i32_39 : i32 to vector<8x1xi32>
    %222 = arith.cmpi eq, %179, %221 : vector<8x1xi32>
    %223 = vector.extract_strided_slice %3 {offsets = [6, 0], sizes = [1, 192], strides = [1, 1]} : vector<16x192xf32> to vector<1x192xf32>
    %224 = vector.shape_cast %222 : vector<8x1xi1> to vector<8x1xi1>
    %225 = vector.broadcast %224 : vector<8x1xi1> to vector<8x192xi1>
    %226 = vector.shape_cast %223 : vector<1x192xf32> to vector<1x192xf32>
    %227 = vector.broadcast %226 : vector<1x192xf32> to vector<8x192xf32>
    %228 = arith.select %225, %227, %220 : vector<8x192xi1>, vector<8x192xf32>
    %c7_i32_40 = arith.constant 7 : i32
    %229 = vector.broadcast %c7_i32_40 : i32 to vector<8x1xi32>
    %230 = arith.cmpi eq, %179, %229 : vector<8x1xi32>
    %231 = vector.extract_strided_slice %3 {offsets = [7, 0], sizes = [1, 192], strides = [1, 1]} : vector<16x192xf32> to vector<1x192xf32>
    %232 = vector.shape_cast %230 : vector<8x1xi1> to vector<8x1xi1>
    %233 = vector.broadcast %232 : vector<8x1xi1> to vector<8x192xi1>
    %234 = vector.shape_cast %231 : vector<1x192xf32> to vector<1x192xf32>
    %235 = vector.broadcast %234 : vector<1x192xf32> to vector<8x192xf32>
    %236 = arith.select %233, %235, %228 : vector<8x192xi1>, vector<8x192xf32>
    %c8_i32_41 = arith.constant 8 : i32
    %237 = vector.broadcast %c8_i32_41 : i32 to vector<8x1xi32>
    %238 = arith.cmpi eq, %179, %237 : vector<8x1xi32>
    %239 = vector.extract_strided_slice %3 {offsets = [8, 0], sizes = [1, 192], strides = [1, 1]} : vector<16x192xf32> to vector<1x192xf32>
    %240 = vector.shape_cast %238 : vector<8x1xi1> to vector<8x1xi1>
    %241 = vector.broadcast %240 : vector<8x1xi1> to vector<8x192xi1>
    %242 = vector.shape_cast %239 : vector<1x192xf32> to vector<1x192xf32>
    %243 = vector.broadcast %242 : vector<1x192xf32> to vector<8x192xf32>
    %244 = arith.select %241, %243, %236 : vector<8x192xi1>, vector<8x192xf32>
    %c9_i32_42 = arith.constant 9 : i32
    %245 = vector.broadcast %c9_i32_42 : i32 to vector<8x1xi32>
    %246 = arith.cmpi eq, %179, %245 : vector<8x1xi32>
    %247 = vector.extract_strided_slice %3 {offsets = [9, 0], sizes = [1, 192], strides = [1, 1]} : vector<16x192xf32> to vector<1x192xf32>
    %248 = vector.shape_cast %246 : vector<8x1xi1> to vector<8x1xi1>
    %249 = vector.broadcast %248 : vector<8x1xi1> to vector<8x192xi1>
    %250 = vector.shape_cast %247 : vector<1x192xf32> to vector<1x192xf32>
    %251 = vector.broadcast %250 : vector<1x192xf32> to vector<8x192xf32>
    %252 = arith.select %249, %251, %244 : vector<8x192xi1>, vector<8x192xf32>
    %c10_i32_43 = arith.constant 10 : i32
    %253 = vector.broadcast %c10_i32_43 : i32 to vector<8x1xi32>
    %254 = arith.cmpi eq, %179, %253 : vector<8x1xi32>
    %255 = vector.extract_strided_slice %3 {offsets = [10, 0], sizes = [1, 192], strides = [1, 1]} : vector<16x192xf32> to vector<1x192xf32>
    %256 = vector.shape_cast %254 : vector<8x1xi1> to vector<8x1xi1>
    %257 = vector.broadcast %256 : vector<8x1xi1> to vector<8x192xi1>
    %258 = vector.shape_cast %255 : vector<1x192xf32> to vector<1x192xf32>
    %259 = vector.broadcast %258 : vector<1x192xf32> to vector<8x192xf32>
    %260 = arith.select %257, %259, %252 : vector<8x192xi1>, vector<8x192xf32>
    %c8 = arith.constant 8 : index
    %c0_44 = arith.constant 0 : index
    %261 = vector.load %arg7[%c8, %c0_44] : memref<32x128xf32, #tpu.memory_space<vmem>>, vector<8x128xf32>
    tpu.vector_store %arg7[%c8, %c0_44], %169 {strides = array<i32>} : memref<32x128xf32, #tpu.memory_space<vmem>>, vector<8x128xf32>,
    %262 = vector.extract_strided_slice %9 {offsets = [16, 0], sizes = [8, 192], strides = [1, 1]} : vector<32x192xf32> to vector<8x192xf32>
    %263 = arith.addf %262, %166 : vector<8x192xf32>
    %264 = arith.addf %263, %260 : vector<8x192xf32>
    %265 = vector.extract_strided_slice %264 {offsets = [0, 0], sizes = [8, 128], strides = [1, 1]} : vector<8x192xf32> to vector<8x128xf32>
    %266 = arith.negf %265 : vector<8x128xf32>
    %267 = math.exp %266 : vector<8x128xf32>
    %cst_45 = arith.constant 1.000000e+00 : f32
    %268 = vector.broadcast %cst_45 : f32 to vector<8x128xf32>
    %269 = arith.addf %268, %267 : vector<8x128xf32>
    %270 = arith.divf %268, %269 : vector<8x128xf32>
    %271 = vector.extract_strided_slice %264 {offsets = [0, 128], sizes = [8, 32], strides = [1, 1]} : vector<8x192xf32> to vector<8x32xf32>
    %272 = math.tanh %271 : vector<8x32xf32>
    %273 = vector.extract_strided_slice %270 {offsets = [0, 0], sizes = [8, 32], strides = [1, 1]} : vector<8x128xf32> to vector<8x32xf32>
    %274 = arith.mulf %273, %272 : vector<8x32xf32>
    %275 = vector.extract_strided_slice %270 {offsets = [0, 32], sizes = [8, 32], strides = [1, 1]} : vector<8x128xf32> to vector<8x32xf32>
    %276 = arith.mulf %275, %154 : vector<8x32xf32>
    %277 = arith.addf %274, %276 : vector<8x32xf32>
    %278 = vector.extract_strided_slice %270 {offsets = [0, 64], sizes = [8, 32], strides = [1, 1]} : vector<8x128xf32> to vector<8x32xf32>
    %279 = math.tanh %277 : vector<8x32xf32>
    %280 = arith.mulf %278, %279 : vector<8x32xf32>
    %281 = vector.extract_strided_slice %270 {offsets = [0, 96], sizes = [8, 32], strides = [1, 1]} : vector<8x128xf32> to vector<8x32xf32>
    %282 = arith.mulf %281, %280 : vector<8x32xf32>
    %cst_46 = arith.constant 1.000000e+00 : f32
    %283 = vector.broadcast %cst_46 : f32 to vector<8x32xf32>
    %284 = arith.subf %283, %281 : vector<8x32xf32>
    %285 = vector.extract_strided_slice %264 {offsets = [0, 160], sizes = [8, 32], strides = [1, 1]} : vector<8x192xf32> to vector<8x32xf32>
    %286 = arith.mulf %284, %285 : vector<8x32xf32>
    %287 = arith.addf %282, %286 : vector<8x32xf32>
    %288 = arith.truncf %287 : vector<8x32xf32> to vector<8x32xbf16>
    %cst_47 = arith.constant dense<0.000000e+00> : vector<8x192xf32>
    %289 = tpu.matmul %288, %0, %cst_47 {dimension_numbers = #tpu.dot_dimension_numbers<[1], [0], [0], [1], [0, 0, 1, 1], [], []>} : vector<8x32xbf16>, vector<32x192xbf16>, vector<8x192xf32> -> vector<8x192xf32>
    %cst_48 = arith.constant dense<0.000000e+00> : vector<8x128xf32>
    %290 = tpu.matmul %288, %1, %cst_48 {dimension_numbers = #tpu.dot_dimension_numbers<[1], [0], [0], [1], [0, 0, 1, 1], [], []>} : vector<8x32xbf16>, vector<32x128xbf16>, vector<8x128xf32> -> vector<8x128xf32>
    %291 = vector.broadcast %2 : vector<1x128xf32> to vector<8x128xf32>
    %292 = arith.addf %290, %291 : vector<8x128xf32>
    %cst_49 = arith.constant dense<0xFF800000> : vector<8xf32>
    %293 = vector.multi_reduction <maximumf>, %292, %cst_49 [1] : vector<8x128xf32> to vector<8xf32>
    %294 = vector.shape_cast %293 : vector<8xf32> to vector<8x1xf32>
    %295 = vector.broadcast %294 : vector<8x1xf32> to vector<8x128xf32>
    %296 = arith.cmpf oeq, %292, %295 : vector<8x128xf32>
    %c128_i32_50 = arith.constant 128 : i32
    %297 = vector.broadcast %c128_i32_50 : i32 to vector<8x128xi32>
    %298 = arith.select %296, %15, %297 : vector<8x128xi1>, vector<8x128xi32>
    %cst_51 = arith.constant dense<2147483647> : vector<8xi32>
    %299 = vector.multi_reduction <minsi>, %298, %cst_51 [1] : vector<8x128xi32> to vector<8xi32>
    %300 = vector.shape_cast %299 : vector<8xi32> to vector<8x1xi32>
    %c1_i32_52 = arith.constant 1 : i32
    %301 = vector.broadcast %c1_i32_52 : i32 to vector<8x1xi32>
    %302 = arith.addi %300, %301 : vector<8x1xi32>
    %cst_53 = arith.constant 0.000000e+00 : f32
    %303 = vector.broadcast %cst_53 : f32 to vector<8x192xf32>
    %c1_i32_54 = arith.constant 1 : i32
    %304 = vector.broadcast %c1_i32_54 : i32 to vector<8x1xi32>
    %305 = arith.cmpi eq, %302, %304 : vector<8x1xi32>
    %306 = vector.extract_strided_slice %3 {offsets = [1, 0], sizes = [1, 192], strides = [1, 1]} : vector<16x192xf32> to vector<1x192xf32>
    %307 = vector.shape_cast %305 : vector<8x1xi1> to vector<8x1xi1>
    %308 = vector.broadcast %307 : vector<8x1xi1> to vector<8x192xi1>
    %309 = vector.shape_cast %306 : vector<1x192xf32> to vector<1x192xf32>
    %310 = vector.broadcast %309 : vector<1x192xf32> to vector<8x192xf32>
    %311 = arith.select %308, %310, %303 : vector<8x192xi1>, vector<8x192xf32>
    %c2_i32_55 = arith.constant 2 : i32
    %312 = vector.broadcast %c2_i32_55 : i32 to vector<8x1xi32>
    %313 = arith.cmpi eq, %302, %312 : vector<8x1xi32>
    %314 = vector.extract_strided_slice %3 {offsets = [2, 0], sizes = [1, 192], strides = [1, 1]} : vector<16x192xf32> to vector<1x192xf32>
    %315 = vector.shape_cast %313 : vector<8x1xi1> to vector<8x1xi1>
    %316 = vector.broadcast %315 : vector<8x1xi1> to vector<8x192xi1>
    %317 = vector.shape_cast %314 : vector<1x192xf32> to vector<1x192xf32>
    %318 = vector.broadcast %317 : vector<1x192xf32> to vector<8x192xf32>
    %319 = arith.select %316, %318, %311 : vector<8x192xi1>, vector<8x192xf32>
    %c3_i32_56 = arith.constant 3 : i32
    %320 = vector.broadcast %c3_i32_56 : i32 to vector<8x1xi32>
    %321 = arith.cmpi eq, %302, %320 : vector<8x1xi32>
    %322 = vector.extract_strided_slice %3 {offsets = [3, 0], sizes = [1, 192], strides = [1, 1]} : vector<16x192xf32> to vector<1x192xf32>
    %323 = vector.shape_cast %321 : vector<8x1xi1> to vector<8x1xi1>
    %324 = vector.broadcast %323 : vector<8x1xi1> to vector<8x192xi1>
    %325 = vector.shape_cast %322 : vector<1x192xf32> to vector<1x192xf32>
    %326 = vector.broadcast %325 : vector<1x192xf32> to vector<8x192xf32>
    %327 = arith.select %324, %326, %319 : vector<8x192xi1>, vector<8x192xf32>
    %c4_i32_57 = arith.constant 4 : i32
    %328 = vector.broadcast %c4_i32_57 : i32 to vector<8x1xi32>
    %329 = arith.cmpi eq, %302, %328 : vector<8x1xi32>
    %330 = vector.extract_strided_slice %3 {offsets = [4, 0], sizes = [1, 192], strides = [1, 1]} : vector<16x192xf32> to vector<1x192xf32>
    %331 = vector.shape_cast %329 : vector<8x1xi1> to vector<8x1xi1>
    %332 = vector.broadcast %331 : vector<8x1xi1> to vector<8x192xi1>
    %333 = vector.shape_cast %330 : vector<1x192xf32> to vector<1x192xf32>
    %334 = vector.broadcast %333 : vector<1x192xf32> to vector<8x192xf32>
    %335 = arith.select %332, %334, %327 : vector<8x192xi1>, vector<8x192xf32>
    %c5_i32_58 = arith.constant 5 : i32
    %336 = vector.broadcast %c5_i32_58 : i32 to vector<8x1xi32>
    %337 = arith.cmpi eq, %302, %336 : vector<8x1xi32>
    %338 = vector.extract_strided_slice %3 {offsets = [5, 0], sizes = [1, 192], strides = [1, 1]} : vector<16x192xf32> to vector<1x192xf32>
    %339 = vector.shape_cast %337 : vector<8x1xi1> to vector<8x1xi1>
    %340 = vector.broadcast %339 : vector<8x1xi1> to vector<8x192xi1>
    %341 = vector.shape_cast %338 : vector<1x192xf32> to vector<1x192xf32>
    %342 = vector.broadcast %341 : vector<1x192xf32> to vector<8x192xf32>
    %343 = arith.select %340, %342, %335 : vector<8x192xi1>, vector<8x192xf32>
    %c6_i32_59 = arith.constant 6 : i32
    %344 = vector.broadcast %c6_i32_59 : i32 to vector<8x1xi32>
    %345 = arith.cmpi eq, %302, %344 : vector<8x1xi32>
    %346 = vector.extract_strided_slice %3 {offsets = [6, 0], sizes = [1, 192], strides = [1, 1]} : vector<16x192xf32> to vector<1x192xf32>
    %347 = vector.shape_cast %345 : vector<8x1xi1> to vector<8x1xi1>
    %348 = vector.broadcast %347 : vector<8x1xi1> to vector<8x192xi1>
    %349 = vector.shape_cast %346 : vector<1x192xf32> to vector<1x192xf32>
    %350 = vector.broadcast %349 : vector<1x192xf32> to vector<8x192xf32>
    %351 = arith.select %348, %350, %343 : vector<8x192xi1>, vector<8x192xf32>
    %c7_i32_60 = arith.constant 7 : i32
    %352 = vector.broadcast %c7_i32_60 : i32 to vector<8x1xi32>
    %353 = arith.cmpi eq, %302, %352 : vector<8x1xi32>
    %354 = vector.extract_strided_slice %3 {offsets = [7, 0], sizes = [1, 192], strides = [1, 1]} : vector<16x192xf32> to vector<1x192xf32>
    %355 = vector.shape_cast %353 : vector<8x1xi1> to vector<8x1xi1>
    %356 = vector.broadcast %355 : vector<8x1xi1> to vector<8x192xi1>
    %357 = vector.shape_cast %354 : vector<1x192xf32> to vector<1x192xf32>
    %358 = vector.broadcast %357 : vector<1x192xf32> to vector<8x192xf32>
    %359 = arith.select %356, %358, %351 : vector<8x192xi1>, vector<8x192xf32>
    %c8_i32_61 = arith.constant 8 : i32
    %360 = vector.broadcast %c8_i32_61 : i32 to vector<8x1xi32>
    %361 = arith.cmpi eq, %302, %360 : vector<8x1xi32>
    %362 = vector.extract_strided_slice %3 {offsets = [8, 0], sizes = [1, 192], strides = [1, 1]} : vector<16x192xf32> to vector<1x192xf32>
    %363 = vector.shape_cast %361 : vector<8x1xi1> to vector<8x1xi1>
    %364 = vector.broadcast %363 : vector<8x1xi1> to vector<8x192xi1>
    %365 = vector.shape_cast %362 : vector<1x192xf32> to vector<1x192xf32>
    %366 = vector.broadcast %365 : vector<1x192xf32> to vector<8x192xf32>
    %367 = arith.select %364, %366, %359 : vector<8x192xi1>, vector<8x192xf32>
    %c9_i32_62 = arith.constant 9 : i32
    %368 = vector.broadcast %c9_i32_62 : i32 to vector<8x1xi32>
    %369 = arith.cmpi eq, %302, %368 : vector<8x1xi32>
    %370 = vector.extract_strided_slice %3 {offsets = [9, 0], sizes = [1, 192], strides = [1, 1]} : vector<16x192xf32> to vector<1x192xf32>
    %371 = vector.shape_cast %369 : vector<8x1xi1> to vector<8x1xi1>
    %372 = vector.broadcast %371 : vector<8x1xi1> to vector<8x192xi1>
    %373 = vector.shape_cast %370 : vector<1x192xf32> to vector<1x192xf32>
    %374 = vector.broadcast %373 : vector<1x192xf32> to vector<8x192xf32>
    %375 = arith.select %372, %374, %367 : vector<8x192xi1>, vector<8x192xf32>
    %c10_i32_63 = arith.constant 10 : i32
    %376 = vector.broadcast %c10_i32_63 : i32 to vector<8x1xi32>
    %377 = arith.cmpi eq, %302, %376 : vector<8x1xi32>
    %378 = vector.extract_strided_slice %3 {offsets = [10, 0], sizes = [1, 192], strides = [1, 1]} : vector<16x192xf32> to vector<1x192xf32>
    %379 = vector.shape_cast %377 : vector<8x1xi1> to vector<8x1xi1>
    %380 = vector.broadcast %379 : vector<8x1xi1> to vector<8x192xi1>
    %381 = vector.shape_cast %378 : vector<1x192xf32> to vector<1x192xf32>
    %382 = vector.broadcast %381 : vector<1x192xf32> to vector<8x192xf32>
    %383 = arith.select %380, %382, %375 : vector<8x192xi1>, vector<8x192xf32>
    %c16 = arith.constant 16 : index
    %c0_64 = arith.constant 0 : index
    %384 = vector.load %arg7[%c16, %c0_64] : memref<32x128xf32, #tpu.memory_space<vmem>>, vector<8x128xf32>
    tpu.vector_store %arg7[%c16, %c0_64], %292 {strides = array<i32>} : memref<32x128xf32, #tpu.memory_space<vmem>>, vector<8x128xf32>,
    %385 = vector.extract_strided_slice %9 {offsets = [24, 0], sizes = [8, 192], strides = [1, 1]} : vector<32x192xf32> to vector<8x192xf32>
    %386 = arith.addf %385, %289 : vector<8x192xf32>
    %387 = arith.addf %386, %383 : vector<8x192xf32>
    %388 = vector.extract_strided_slice %387 {offsets = [0, 0], sizes = [8, 128], strides = [1, 1]} : vector<8x192xf32> to vector<8x128xf32>
    %389 = arith.negf %388 : vector<8x128xf32>
    %390 = math.exp %389 : vector<8x128xf32>
    %cst_65 = arith.constant 1.000000e+00 : f32
    %391 = vector.broadcast %cst_65 : f32 to vector<8x128xf32>
    %392 = arith.addf %391, %390 : vector<8x128xf32>
    %393 = arith.divf %391, %392 : vector<8x128xf32>
    %394 = vector.extract_strided_slice %387 {offsets = [0, 128], sizes = [8, 32], strides = [1, 1]} : vector<8x192xf32> to vector<8x32xf32>
    %395 = math.tanh %394 : vector<8x32xf32>
    %396 = vector.extract_strided_slice %393 {offsets = [0, 0], sizes = [8, 32], strides = [1, 1]} : vector<8x128xf32> to vector<8x32xf32>
    %397 = arith.mulf %396, %395 : vector<8x32xf32>
    %398 = vector.extract_strided_slice %393 {offsets = [0, 32], sizes = [8, 32], strides = [1, 1]} : vector<8x128xf32> to vector<8x32xf32>
    %399 = arith.mulf %398, %277 : vector<8x32xf32>
    %400 = arith.addf %397, %399 : vector<8x32xf32>
    %401 = vector.extract_strided_slice %393 {offsets = [0, 64], sizes = [8, 32], strides = [1, 1]} : vector<8x128xf32> to vector<8x32xf32>
    %402 = math.tanh %400 : vector<8x32xf32>
    %403 = arith.mulf %401, %402 : vector<8x32xf32>
    %404 = vector.extract_strided_slice %393 {offsets = [0, 96], sizes = [8, 32], strides = [1, 1]} : vector<8x128xf32> to vector<8x32xf32>
    %405 = arith.mulf %404, %403 : vector<8x32xf32>
    %cst_66 = arith.constant 1.000000e+00 : f32
    %406 = vector.broadcast %cst_66 : f32 to vector<8x32xf32>
    %407 = arith.subf %406, %404 : vector<8x32xf32>
    %408 = vector.extract_strided_slice %387 {offsets = [0, 160], sizes = [8, 32], strides = [1, 1]} : vector<8x192xf32> to vector<8x32xf32>
    %409 = arith.mulf %407, %408 : vector<8x32xf32>
    %410 = arith.addf %405, %409 : vector<8x32xf32>
    %411 = arith.truncf %410 : vector<8x32xf32> to vector<8x32xbf16>
    %cst_67 = arith.constant dense<0.000000e+00> : vector<8x128xf32>
    %412 = tpu.matmul %411, %1, %cst_67 {dimension_numbers = #tpu.dot_dimension_numbers<[1], [0], [0], [1], [0, 0, 1, 1], [], []>} : vector<8x32xbf16>, vector<32x128xbf16>, vector<8x128xf32> -> vector<8x128xf32>
    %413 = vector.broadcast %2 : vector<1x128xf32> to vector<8x128xf32>
    %414 = arith.addf %412, %413 : vector<8x128xf32>
    %c24 = arith.constant 24 : index
    %c0_68 = arith.constant 0 : index
    %415 = vector.load %arg7[%c24, %c0_68] : memref<32x128xf32, #tpu.memory_space<vmem>>, vector<8x128xf32>
    tpu.vector_store %arg7[%c24, %c0_68], %414 {strides = array<i32>} : memref<32x128xf32, #tpu.memory_space<vmem>>, vector<8x128xf32>,
    return
  }
}

</mosaic_0001>

<llo_original>
// kernel: tpu_custom_call.1
$region0: #{tpu_custom_call.1}
  #allocation0 [shape = 'u32[]', space=smem, size = 0x4, offset = 0x4, fixed_abs, tag = 'smem constant byte address 0x4 - core index']
  #allocation1 [shape = 'u32[144,128]{1,0:T(1,128)}', space=vmem, size = 0x12000, scoped, tag = 'internal scratch']
  %s0 = inlined_call_operand.hbm [shape: bf16[32,32], index: 0, kind: input, shape index: {}]
  %s1 = inlined_call_operand.hbm [shape: bf16[32,192], index: 1, kind: input, shape index: {}]
  %s2 = inlined_call_operand.hbm [shape: bf16[32,192], index: 2, kind: input, shape index: {}]
  %s3 = inlined_call_operand.vmem [shape: f32[1,192], index: 3, kind: input, shape index: {}]
  %s4 = inlined_call_operand.hbm [shape: bf16[32,128], index: 4, kind: input, shape index: {}]
  %s5 = inlined_call_operand.vmem [shape: f32[1,128], index: 5, kind: input, shape index: {}]
  %s6 = inlined_call_operand.hbm [shape: f32[16,192], index: 6, kind: input, shape index: {}]
  %s7 = inlined_call_operand.hbm [shape: f32[32,128], index: 7, kind: output, shape index: {}]
  %s8 = sld [smem:[#allocation0]]
  $region58: #{tpu_custom_call.1} parent=0
    _
  %s10 = ssub.s32 1, %s8
  %s11 = scalar_select 0, %s10, %s8
  $region1: #{tpu_custom_call.1} parent=0
    #allocation2 [shape = 'u8[8192]{0}', space=vmem, size = 0x2000, scoped, tag = 'input window, operand 0, single buffered']
    #allocation3 [shape = 's32[1]{0}', space=sflag, size = 0x4, scoped, tag = 'scoped memory for tpu_custom_call.1']
    #allocation4 [shape = 's32[1]{0}', space=sflag, size = 0x4, scoped, tag = 'scoped memory for tpu_custom_call.1']
    #allocation5 [shape = 'u8[16384]{0}', space=vmem, size = 0x4000, scoped, tag = 'input window, operand 1, single buffered']
    #allocation6 [shape = 's32[1]{0}', space=sflag, size = 0x4, scoped, tag = 'scoped memory for tpu_custom_call.1']
    #allocation7 [shape = 'u8[16384]{0}', space=vmem, size = 0x4000, scoped, tag = 'input window, operand 2, single buffered']
    #allocation8 [shape = 'u8[8192]{0}', space=vmem, size = 0x2000, scoped, tag = 'input window, operand 4, single buffered']
    #allocation9 [shape = 's32[1]{0}', space=sflag, size = 0x4, scoped, tag = 'scoped memory for tpu_custom_call.1']
    #allocation10 [shape = 'u8[16384]{0}', space=vmem, size = 0x4000, scoped, tag = 'input window, operand 6, single buffered']
    #allocation11 [shape = 'u8[16384]{0}', space=vmem, size = 0x4000, scoped, tag = 'output window, operand 0, single buffered']
    %12 = vsyncpa [#allocation3], 0
    %13 = vsyncpa [#allocation6], 0
    %14 = vsyncpa [#allocation9], 0
    %15 = vsyncpa [#allocation4], 0
    // Predicated region
    $region2: #{tpu_custom_call.1} parent=1 // pred_check
      _
    $region3: #{tpu_custom_call.1} parent=1 // pred_check_branch
      %17 = sbr.rel (0) target = $region5
    $region4: #{tpu_custom_call.1} parent=1 // pred_region
      %s19 = ssub.s32 256, 256
      %20 = vsyncadd [#allocation3], %s19
      %s21 = sshll.u32 [#allocation2], 4
      %s22 = int_to_ptr.vmem [resolvable:$true] %s21
      %27 = dma.hbm_to_vmem [thread:$0]  %s0, 256, %s22, [#allocation3], 64, 64, 4
    $region5: #{tpu_custom_call.1} parent=1 // pred_fallthru
      _
    // Predicated region
    $region6: #{tpu_custom_call.1} parent=1 // pred_check
      _
    $region7: #{tpu_custom_call.1} parent=1 // pred_check_branch
      %29 = sbr.rel (0) target = $region9
    $region8: #{tpu_custom_call.1} parent=1 // pred_region
      %s31 = ssub.s32 512, 512
      %32 = vsyncadd [#allocation6], %s31
      %s33 = sshll.u32 [#allocation5], 4
      %s34 = int_to_ptr.vmem [resolvable:$true] %s33
      %39 = dma.hbm_to_vmem [thread:$0]  %s1, 512, %s34, [#allocation6], 128, 128, 8
    $region9: #{tpu_custom_call.1} parent=1 // pred_fallthru
      _
    // Predicated region
    $region10: #{tpu_custom_call.1} parent=1 // pred_check
      _
    $region11: #{tpu_custom_call.1} parent=1 // pred_check_branch
      %41 = sbr.rel (0) target = $region13
    $region12: #{tpu_custom_call.1} parent=1 // pred_region
      %s43 = ssub.s32 512, 512
      %44 = vsyncadd [#allocation6], %s43
      %s45 = sshll.u32 [#allocation7], 4
      %s46 = int_to_ptr.vmem [resolvable:$true] %s45
      %51 = dma.hbm_to_vmem [thread:$0]  %s2, 512, %s46, [#allocation6], 128, 128, 8
    $region13: #{tpu_custom_call.1} parent=1 // pred_fallthru
      _
    // Predicated region
    $region14: #{tpu_custom_call.1} parent=1 // pred_check
      _
    $region15: #{tpu_custom_call.1} parent=1 // pred_check_branch
      %53 = sbr.rel (0) target = $region17
    $region16: #{tpu_custom_call.1} parent=1 // pred_region
      _
    $region17: #{tpu_custom_call.1} parent=1 // pred_fallthru
      _
    // Predicated region
    $region18: #{tpu_custom_call.1} parent=1 // pred_check
      _
    $region19: #{tpu_custom_call.1} parent=1 // pred_check_branch
      %55 = sbr.rel (0) target = $region21
    $region20: #{tpu_custom_call.1} parent=1 // pred_region
      %s57 = ssub.s32 256, 256
      %58 = vsyncadd [#allocation9], %s57
      %s59 = sshll.u32 [#allocation8], 4
      %s60 = int_to_ptr.vmem [resolvable:$true] %s59
      %65 = dma.hbm_to_vmem [thread:$0]  %s4, 256, %s60, [#allocation9], 64, 64, 4
    $region21: #{tpu_custom_call.1} parent=1 // pred_fallthru
      _
    // Predicated region
    $region22: #{tpu_custom_call.1} parent=1 // pred_check
      _
    $region23: #{tpu_custom_call.1} parent=1 // pred_check_branch
      %67 = sbr.rel (0) target = $region25
    $region24: #{tpu_custom_call.1} parent=1 // pred_region
      _
    $region25: #{tpu_custom_call.1} parent=1 // pred_fallthru
      _
    // Predicated region
    $region26: #{tpu_custom_call.1} parent=1 // pred_check
      _
    $region27: #{tpu_custom_call.1} parent=1 // pred_check_branch
      %69 = sbr.rel (0) target = $region29
    $region28: #{tpu_custom_call.1} parent=1 // pred_region
      %s71 = ssub.s32 512, 512
      %72 = vsyncadd [#allocation9], %s71
      %s73 = sshll.u32 [#allocation10], 4
      %s74 = int_to_ptr.vmem [resolvable:$true] %s73
      %79 = dma.hbm_to_vmem [thread:$0]  %s6, 512, %s74, [#allocation9], 256, 256, 16
    $region29: #{tpu_custom_call.1} parent=1 // pred_fallthru
      _
    // Predicated region
    $region30: #{tpu_custom_call.1} parent=1 // pred_check
      _
    $region31: #{tpu_custom_call.1} parent=1 // pred_check_branch
      %81 = sbr.rel (0) target = $region33
    $region32: #{tpu_custom_call.1} parent=1 // pred_region
      %82 = dma.done [#allocation3], 256
    $region33: #{tpu_custom_call.1} parent=1 // pred_fallthru
      _
    // Predicated region
    $region34: #{tpu_custom_call.1} parent=1 // pred_check
      _
    $region35: #{tpu_custom_call.1} parent=1 // pred_check_branch
      %84 = sbr.rel (0) target = $region37
    $region36: #{tpu_custom_call.1} parent=1 // pred_region
      %85 = dma.done [#allocation6], 512
    $region37: #{tpu_custom_call.1} parent=1 // pred_fallthru
      _
    // Predicated region
    $region38: #{tpu_custom_call.1} parent=1 // pred_check
      _
    $region39: #{tpu_custom_call.1} parent=1 // pred_check_branch
      %87 = sbr.rel (0) target = $region41
    $region40: #{tpu_custom_call.1} parent=1 // pred_region
      %88 = dma.done [#allocation6], 512
    $region41: #{tpu_custom_call.1} parent=1 // pred_fallthru
      _
    // Predicated region
    $region42: #{tpu_custom_call.1} parent=1 // pred_check
      _
    $region43: #{tpu_custom_call.1} parent=1 // pred_check_branch
      %90 = sbr.rel (0) target = $region45
    $region44: #{tpu_custom_call.1} parent=1 // pred_region
      %91 = dma.done [#allocation9], 256
    $region45: #{tpu_custom_call.1} parent=1 // pred_fallthru
      _
    // Predicated region
    $region46: #{tpu_custom_call.1} parent=1 // pred_check
      _
    $region47: #{tpu_custom_call.1} parent=1 // pred_check_branch
      %93 = sbr.rel (0) target = $region49
    $region48: #{tpu_custom_call.1} parent=1 // pred_region
      %94 = dma.done [#allocation9], 512
    $region49: #{tpu_custom_call.1} parent=1 // pred_fallthru
      _
    %v96 = vld [vmem:[#allocation7] sm:$0xff]
    %v97 = vld [vmem:[#allocation7 + $0x8] sm:$0xff]
    %v98 = vld [vmem:[#allocation7 + $0x10] sm:$0xff]
    %v99 = vld [vmem:[#allocation7 + $0x18] sm:$0xff]
    %v100 = vld [vmem:[#allocation8] sm:$0xf]
    %v101 = vld [vmem:[#allocation8 + $0x4] sm:$0xf]
    %v102 = vld [vmem:[#allocation8 + $0x8] sm:$0xf]
    %v103 = vld [vmem:[#allocation8 + $0xc] sm:$0xf]
    %v104 = vld [vmem:[%s5] sm:$0x1]
    %v105 = vld [vmem:[#allocation10] sm:$0xff]
    %v106 = vld [vmem:[#allocation10 + $0x8] sm:$0xff]
    %v107 = vld [vmem:[#allocation10 + $0x10] sm:$0xff]
    %v108 = vld [vmem:[#allocation10 + $0x18] sm:$0xff]
    %v109 = vld [vmem:[#allocation2] sm:$0xf]
    %v110 = vld [vmem:[#allocation2 + $0x4] sm:$0xf]
    %v111 = vld [vmem:[#allocation2 + $0x8] sm:$0xf]
    %v112 = vld [vmem:[#allocation2 + $0xc] sm:$0xf]
    %v113 = vld [vmem:[#allocation5] sm:$0xff]
    %v114 = vld [vmem:[#allocation5 + $0x8] sm:$0xff]
    %v115 = vld [vmem:[#allocation5 + $0x10] sm:$0xff]
    %v116 = vld [vmem:[#allocation5 + $0x18] sm:$0xff]
    %v117 = vld [vmem:[%s3] sm:$0x3]
    %v119 = vlaneseq
    %v120 = vshrl.u32 %v119, 7
    %v121 = vsub.s32 0, %v120
    %v122 = vrot.slane %v117, %v121
    %v123 = vlaneseq
    %v124 = vshrl.u32 %v123, 7
    %v125 = vsub.s32 1, %v124
    %v126 = vrot.slane %v117, %v125
    %v133 = vunpack.c.l.b16 %v109
    %v134 = vunpack.c.l.b16 %v110
    %v135 = vunpack.c.l.b16 %v111
    %v136 = vunpack.c.l.b16 %v112
    %v137 = vpack.c.b16 %v134, %v133
    %v138 = vpack.c.b16 %v136, %v135
    %v143 = vunpack.c.l.b16 %v113
    %v144 = vunpack.c.h.b16 %v113
    %v145 = vunpack.c.l.b16 %v114
    %v146 = vunpack.c.h.b16 %v114
    %v147 = vunpack.c.l.b16 %v115
    %v148 = vunpack.c.h.b16 %v115
    %v149 = vunpack.c.l.b16 %v116
    %v150 = vunpack.c.h.b16 %v116
    %v151 = vpack.c.b16 %v145, %v143
    %v152 = vpack.c.b16 %v146, %v144
    %v153 = vpack.c.b16 %v149, %v147
    %v154 = vpack.c.b16 %v150, %v148
    %vm159 = vcmask 261120
    %v161 = vsel %vm159, %v137, 0
    %v164 = vsel %vm159, %v138, 0
    %166 = vmatprep.subr.bf16.mxu0 %v152
    %167 = vmatpush1.bf16.msra.mxu0 %v151
    %168 = vmatprep.subr.bf16.mxu0 %v154
    %169 = vmatpush1.bf16.msra.mxu0 %v153
    %170 = vmatprep.subr.bf16.mxu0 0
    %171 = vmatpush1.bf16.msra.mxu0 0
    %172 = vmatprep.subr.bf16.mxu0 0
    %173 = vmatpush1.bf16.msra.mxu0 0
    %174 = vmatprep.subr.bf16.mxu0 0
    %175 = vmatpush1.bf16.msra.mxu0 0
    %176 = vmatprep.subr.bf16.mxu0 0
    %177 = vmatpush1.bf16.msra.mxu0 0
    %178 = vmatprep.subr.bf16.mxu0 0
    %179 = vmatpush1.bf16.msra.mxu0 0
    %180 = vmatprep.subr.bf16.mxu0 0
    %181 = vmatpush1.bf16.msra.mxu0 0
    %182 = vmatprep.subr.bf16.mxu0 0
    %183 = vmatpush1.bf16.msra.mxu0 0
    %184 = vmatprep.subr.bf16.mxu0 0
    %185 = vmatpush1.bf16.msra.mxu0 0
    %186 = vmatprep.subr.bf16.mxu0 0
    %187 = vmatpush1.bf16.msra.mxu0 0
    %188 = vmatprep.subr.bf16.mxu0 0
    %189 = vmatpush1.bf16.msra.mxu0 0
    %190 = vmatprep.subr.bf16.mxu0 0
    %191 = vmatpush1.bf16.msra.mxu0 0
    %192 = vmatprep.subr.bf16.mxu0 0
    %193 = vmatpush1.bf16.msra.mxu0 0
    %194 = vmatprep.subr.bf16.mxu0 0
    %195 = vmatpush1.bf16.msra.mxu0 0
    %196 = vmatprep.subr.bf16.mxu0 0
    %197 = vmatpush1.bf16.msra.mxu0 0
    %198 = vmatprep.mubr.bf16.mxu0 0
    %199 = vmatmul.mubr.bf16.gmra.mrb[0].mxu0 %v161
    %v200 = vpop.f32.mrb[0].mxu0
    %v201 = vadd.f32 %v122, %v200
    %v202 = vpop.f32.mrb[0].mxu0
    %v203 = vadd.f32 %v126, %v202
    %v204 = vpop.f32.mrb[0].mxu0
    %v205 = vadd.f32 %v122, %v204
    %v206 = vpop.f32.mrb[0].mxu0
    %v207 = vadd.f32 %v126, %v206
    %208 = vmatprep.mubr.bf16.mxu0 0
    %209 = vmatmul.mubr.bf16.gmra.mrb[0].mxu0 %v164
    %v210 = vpop.f32.mrb[0].mxu0
    %v211 = vadd.f32 %v122, %v210
    %v212 = vpop.f32.mrb[0].mxu0
    %v213 = vadd.f32 %v126, %v212
    %v214 = vpop.f32.mrb[0].mxu0
    %v215 = vadd.f32 %v122, %v214
    %v216 = vpop.f32.mrb[0].mxu0
    %v217 = vadd.f32 %v126, %v216
    %218 = vdwg.mxu0
    %v219 = vlaneseq
    %v220 = vshrl.u32 %v219, 7
    %v221 = vsub.s32 0, %v220
    %v222 = vrot.slane %v105, %v221
    %v223 = vlaneseq
    %v224 = vshrl.u32 %v223, 7
    %v225 = vsub.s32 0, %v224
    %v226 = vrot.slane %v106, %v225
    %v227 = vlaneseq
    %v228 = vand.u32 %v227, 127
    %v229 = vadd.f32 %v201, 0.0
    %v230 = vadd.f32 %v203, 0.0
    %v231 = vadd.f32 %v229, %v222
    %v232 = vadd.f32 %v230, %v226
    %v233 = vxor.u32 %v231, 2147483648
    %v234 = vmul.f32 %v233, 1.442695
    %v235 = vpow.pop %v234
    %v236 = vadd.f32 %v235, 1.0
    %v237 = vrcp.pop %v236
    %v238 = vmul.f32 1.0, %v237
    %v239 = vtanh.pop %v232
    %v240 = vmul.f32 %v238, %v239
    %v241 = vmul.f32 %v238, 0.0
    %243 = vrot.lane.b32.xlu0 %v241, 96
    %v244 = vpop.permute.xlu0 %243
    %v246 = vadd.f32 %v240, %v244
    %v247 = vtanh.pop %v246
    %249 = vrot.lane.b32.xlu0 %v247, 64
    %v250 = vpop.permute.xlu0 %249
    %v252 = vmul.f32 %v238, %v250
    %254 = vrot.lane.b32.xlu0 %v252, 32
    %v255 = vpop.permute.xlu0 %254
    %v257 = vmul.f32 %v238, %v255
    %v258 = vsub.f32 1.0, %v238
    %260 = vrot.lane.b32.xlu0 %v232, 64
    %v261 = vpop.permute.xlu0 %260
    %v263 = vmul.f32 %v258, %v261
    %v264 = vadd.f32 %v257, %v263
    %v265 = vpack.c.bf16 %v264, %v264
    %267 = vrot.lane.b32.xlu0 %v265, 32
    %v268 = vpop.permute.xlu0 %267
    %v273 = vunpack.c.l.b16 %v96
    %v274 = vunpack.c.h.b16 %v96
    %v275 = vunpack.c.l.b16 %v97
    %v276 = vunpack.c.h.b16 %v97
    %v277 = vunpack.c.l.b16 %v98
    %v278 = vunpack.c.h.b16 %v98
    %v279 = vunpack.c.l.b16 %v99
    %v280 = vunpack.c.h.b16 %v99
    %v281 = vpack.c.b16 %v275, %v273
    %v282 = vpack.c.b16 %v276, %v274
    %v283 = vpack.c.b16 %v279, %v277
    %v284 = vpack.c.b16 %v280, %v278
    %v290 = vsel %vm159, %v268, 0
    %292 = vmatprep.subr.bf16.mxu0 %v282
    %293 = vmatpush1.bf16.msra.mxu0 %v281
    %294 = vmatprep.subr.bf16.mxu0 %v284
    %295 = vmatpush1.bf16.msra.mxu0 %v283
    %296 = vmatprep.subr.bf16.mxu0 0
    %297 = vmatpush1.bf16.msra.mxu0 0
    %298 = vmatprep.subr.bf16.mxu0 0
    %299 = vmatpush1.bf16.msra.mxu0 0
    %300 = vmatprep.subr.bf16.mxu0 0
    %301 = vmatpush1.bf16.msra.mxu0 0
    %302 = vmatprep.subr.bf16.mxu0 0
    %303 = vmatpush1.bf16.msra.mxu0 0
    %304 = vmatprep.subr.bf16.mxu0 0
    %305 = vmatpush1.bf16.msra.mxu0 0
    %306 = vmatprep.subr.bf16.mxu0 0
    %307 = vmatpush1.bf16.msra.mxu0 0
    %308 = vmatprep.subr.bf16.mxu0 0
    %309 = vmatpush1.bf16.msra.mxu0 0
    %310 = vmatprep.subr.bf16.mxu0 0
    %311 = vmatpush1.bf16.msra.mxu0 0
    %312 = vmatprep.subr.bf16.mxu0 0
    %313 = vmatpush1.bf16.msra.mxu0 0
    %314 = vmatprep.subr.bf16.mxu0 0
    %315 = vmatpush1.bf16.msra.mxu0 0
    %316 = vmatprep.subr.bf16.mxu0 0
    %317 = vmatpush1.bf16.msra.mxu0 0
    %318 = vmatprep.subr.bf16.mxu0 0
    %319 = vmatpush1.bf16.msra.mxu0 0
    %320 = vmatprep.subr.bf16.mxu0 0
    %321 = vmatpush1.bf16.msra.mxu0 0
    %322 = vmatprep.subr.bf16.mxu0 0
    %323 = vmatpush1.bf16.msra.mxu0 0
    %324 = vmatprep.mubr.bf16.mxu0 0
    %325 = vmatmul.mubr.bf16.gmra.mrb[0].mxu0 %v290
    %v326 = vpop.f32.mrb[0].mxu0
    %v327 = vadd.f32 0.0, %v326
    %v328 = vpop.f32.mrb[0].mxu0
    %v329 = vadd.f32 0.0, %v328
    %v330 = vpop.f32.mrb[0].mxu0
    %v331 = vpop.f32.mrb[0].mxu0
    %332 = vdwg.mxu0
    %v334 = vlaneseq
    %v335 = vshrl.u32 %v334, 7
    %v336 = vsub.s32 0, %v335
    %v337 = vrot.slane %v104, %v336
    %v343 = vunpack.c.l.b16 %v100
    %v344 = vunpack.c.l.b16 %v101
    %v345 = vunpack.c.l.b16 %v102
    %v346 = vunpack.c.l.b16 %v103
    %v347 = vpack.c.b16 %v344, %v343
    %v348 = vpack.c.b16 %v346, %v345
    %351 = vmatprep.subr.bf16.mxu0 0
    %352 = vmatpush1.bf16.msra.mxu0 %v347
    %353 = vmatprep.subr.bf16.mxu0 0
    %354 = vmatpush1.bf16.msra.mxu0 %v348
    %355 = vmatprep.subr.bf16.mxu0 0
    %356 = vmatpush1.bf16.msra.mxu0 0
    %357 = vmatprep.subr.bf16.mxu0 0
    %358 = vmatpush1.bf16.msra.mxu0 0
    %359 = vmatprep.subr.bf16.mxu0 0
    %360 = vmatpush1.bf16.msra.mxu0 0
    %361 = vmatprep.subr.bf16.mxu0 0
    %362 = vmatpush1.bf16.msra.mxu0 0
    %363 = vmatprep.subr.bf16.mxu0 0
    %364 = vmatpush1.bf16.msra.mxu0 0
    %365 = vmatprep.subr.bf16.mxu0 0
    %366 = vmatpush1.bf16.msra.mxu0 0
    %367 = vmatprep.subr.bf16.mxu0 0
    %368 = vmatpush1.bf16.msra.mxu0 0
    %369 = vmatprep.subr.bf16.mxu0 0
    %370 = vmatpush1.bf16.msra.mxu0 0
    %371 = vmatprep.subr.bf16.mxu0 0
    %372 = vmatpush1.bf16.msra.mxu0 0
    %373 = vmatprep.subr.bf16.mxu0 0
    %374 = vmatpush1.bf16.msra.mxu0 0
    %375 = vmatprep.subr.bf16.mxu0 0
    %376 = vmatpush1.bf16.msra.mxu0 0
    %377 = vmatprep.subr.bf16.mxu0 0
    %378 = vmatpush1.bf16.msra.mxu0 0
    %379 = vmatprep.subr.bf16.mxu0 0
    %380 = vmatpush1.bf16.msra.mxu0 0
    %381 = vmatprep.subr.bf16.mxu0 0
    %382 = vmatpush1.bf16.msra.mxu0 0
    %383 = vmatprep.mubr.bf16.mxu0 0
    %384 = vmatmul.mubr.bf16.gmra.mrb[0].mxu0 %v290
    %v385 = vpop.f32.mrb[0].mxu0
    %v386 = vadd.f32 %v337, %v385
    %v387 = vpop.f32.mrb[0].mxu0
    %v388 = vpop.f32.mrb[0].mxu0
    %v389 = vpop.f32.mrb[0].mxu0
    %390 = vdwg.mxu0
    %391 = vmax.xlane.f32.xlu0 %v386
    %v392 = vpop.xlane.xlu0 %391
    %vm393 = vcmp.eq.f32.partialorder %v386, %v392
    %v394 = vsel %vm393, %v228, 128
    %v395 = vand.u32 %v394, 65535
    %v396 = vshra.s32 %v394, 16
    %v397 = vcvt.s32.f32 %v395
    %v398 = vcvt.s32.f32 %v396
    %399 = vmin.xlane.f32.xlu0 %v398
    %v400 = vpop.xlane.xlu0 %399
    %vm401 = vcmp.eq.f32.partialorder %v398, %v400
    %v402 = vsel %vm401, %v397, inf
    %403 = vmin.xlane.f32.xlu0 %v402
    %v404 = vpop.xlane.xlu0 %403
    %v405 = vcvt.f32.s32 %v404
    %v406 = vcvt.f32.s32 %v400
    %v407 = vshll.u32 %v406, 16
    %v408 = vadd.s32 %v407, %v405
    %v409 = vadd.s32 %v408, 1
    %vm410 = vcmp.eq.s32.totalorder %v409, 1
    %v411 = vsel %vm410, 1, 0
    %vm412 = vcmp.eq.s32.totalorder %v411, 1
    %v413 = vlaneseq
    %v414 = vshrl.u32 %v413, 7
    %v415 = vsub.s32 1, %v414
    %v416 = vrot.slane %v105, %v415
    %v417 = vlaneseq
    %v418 = vshrl.u32 %v417, 7
    %v419 = vsub.s32 1, %v418
    %v420 = vrot.slane %v106, %v419
    %v421 = vsel %vm412, %v416, 0.0
    %v422 = vsel %vm412, %v420, 0.0
    %vm423 = vcmp.eq.s32.totalorder %v409, 2
    %v424 = vsel %vm423, 1, 0
    %vm425 = vcmp.eq.s32.totalorder %v424, 1
    %v426 = vlaneseq
    %v427 = vshrl.u32 %v426, 7
    %v428 = vsub.s32 2, %v427
    %v429 = vrot.slane %v105, %v428
    %v430 = vlaneseq
    %v431 = vshrl.u32 %v430, 7
    %v432 = vsub.s32 2, %v431
    %v433 = vrot.slane %v106, %v432
    %v434 = vsel %vm425, %v429, %v421
    %v435 = vsel %vm425, %v433, %v422
    %vm436 = vcmp.eq.s32.totalorder %v409, 3
    %v437 = vsel %vm436, 1, 0
    %vm438 = vcmp.eq.s32.totalorder %v437, 1
    %v439 = vlaneseq
    %v440 = vshrl.u32 %v439, 7
    %v441 = vsub.s32 3, %v440
    %v442 = vrot.slane %v105, %v441
    %v443 = vlaneseq
    %v444 = vshrl.u32 %v443, 7
    %v445 = vsub.s32 3, %v444
    %v446 = vrot.slane %v106, %v445
    %v447 = vsel %vm438, %v442, %v434
    %v448 = vsel %vm438, %v446, %v435
    %vm449 = vcmp.eq.s32.totalorder %v409, 4
    %v450 = vsel %vm449, 1, 0
    %vm451 = vcmp.eq.s32.totalorder %v450, 1
    %v452 = vlaneseq
    %v453 = vshrl.u32 %v452, 7
    %v454 = vsub.s32 4, %v453
    %v455 = vrot.slane %v105, %v454
    %v456 = vlaneseq
    %v457 = vshrl.u32 %v456, 7
    %v458 = vsub.s32 4, %v457
    %v459 = vrot.slane %v106, %v458
    %v460 = vsel %vm451, %v455, %v447
    %v461 = vsel %vm451, %v459, %v448
    %vm462 = vcmp.eq.s32.totalorder %v409, 5
    %v463 = vsel %vm462, 1, 0
    %vm464 = vcmp.eq.s32.totalorder %v463, 1
    %v465 = vlaneseq
    %v466 = vshrl.u32 %v465, 7
    %v467 = vsub.s32 5, %v466
    %v468 = vrot.slane %v105, %v467
    %v469 = vlaneseq
    %v470 = vshrl.u32 %v469, 7
    %v471 = vsub.s32 5, %v470
    %v472 = vrot.slane %v106, %v471
    %v473 = vsel %vm464, %v468, %v460
    %v474 = vsel %vm464, %v472, %v461
    %vm475 = vcmp.eq.s32.totalorder %v409, 6
    %v476 = vsel %vm475, 1, 0
    %vm477 = vcmp.eq.s32.totalorder %v476, 1
    %v478 = vlaneseq
    %v479 = vshrl.u32 %v478, 7
    %v480 = vsub.s32 6, %v479
    %v481 = vrot.slane %v105, %v480
    %v482 = vlaneseq
    %v483 = vshrl.u32 %v482, 7
    %v484 = vsub.s32 6, %v483
    %v485 = vrot.slane %v106, %v484
    %v486 = vsel %vm477, %v481, %v473
    %v487 = vsel %vm477, %v485, %v474
    %vm488 = vcmp.eq.s32.totalorder %v409, 7
    %v489 = vsel %vm488, 1, 0
    %vm490 = vcmp.eq.s32.totalorder %v489, 1
    %v491 = vlaneseq
    %v492 = vshrl.u32 %v491, 7
    %v493 = vsub.s32 7, %v492
    %v494 = vrot.slane %v105, %v493
    %v495 = vlaneseq
    %v496 = vshrl.u32 %v495, 7
    %v497 = vsub.s32 7, %v496
    %v498 = vrot.slane %v106, %v497
    %v499 = vsel %vm490, %v494, %v486
    %v500 = vsel %vm490, %v498, %v487
    %vm501 = vcmp.eq.s32.totalorder %v409, 8
    %v502 = vsel %vm501, 1, 0
    %vm503 = vcmp.eq.s32.totalorder %v502, 1
    %v504 = vlaneseq
    %v505 = vshrl.u32 %v504, 7
    %v506 = vsub.s32 0, %v505
    %v507 = vrot.slane %v107, %v506
    %v508 = vlaneseq
    %v509 = vshrl.u32 %v508, 7
    %v510 = vsub.s32 0, %v509
    %v511 = vrot.slane %v108, %v510
    %v512 = vsel %vm503, %v507, %v499
    %v513 = vsel %vm503, %v511, %v500
    %vm514 = vcmp.eq.s32.totalorder %v409, 9
    %v515 = vsel %vm514, 1, 0
    %vm516 = vcmp.eq.s32.totalorder %v515, 1
    %v517 = vlaneseq
    %v518 = vshrl.u32 %v517, 7
    %v519 = vsub.s32 1, %v518
    %v520 = vrot.slane %v107, %v519
    %v521 = vlaneseq
    %v522 = vshrl.u32 %v521, 7
    %v523 = vsub.s32 1, %v522
    %v524 = vrot.slane %v108, %v523
    %v525 = vsel %vm516, %v520, %v512
    %v526 = vsel %vm516, %v524, %v513
    %vm527 = vcmp.eq.s32.totalorder %v409, 10
    %v528 = vsel %vm527, 1, 0
    %vm529 = vcmp.eq.s32.totalorder %v528, 1
    %v530 = vlaneseq
    %v531 = vshrl.u32 %v530, 7
    %v532 = vsub.s32 2, %v531
    %v533 = vrot.slane %v107, %v532
    %v534 = vlaneseq
    %v535 = vshrl.u32 %v534, 7
    %v536 = vsub.s32 2, %v535
    %v537 = vrot.slane %v108, %v536
    %v538 = vsel %vm529, %v533, %v525
    %v539 = vsel %vm529, %v537, %v526
    %540 = vst [vmem:[#allocation11] sm:$0xff] %v386
    %v541 = vadd.f32 %v205, %v327
    %v542 = vadd.f32 %v207, %v329
    %v543 = vadd.f32 %v541, %v538
    %v544 = vadd.f32 %v542, %v539
    %v545 = vxor.u32 %v543, 2147483648
    %v546 = vmul.f32 %v545, 1.442695
    %v547 = vpow.pop %v546
    %v548 = vadd.f32 %v547, 1.0
    %v549 = vrcp.pop %v548
    %v550 = vmul.f32 1.0, %v549
    %v551 = vtanh.pop %v544
    %v552 = vmul.f32 %v550, %v551
    %554 = vrot.lane.b32.xlu0 %v246, 32
    %v555 = vpop.permute.xlu0 %554
    %v557 = vmul.f32 %v550, %v555
    %559 = vrot.lane.b32.xlu0 %v557, 96
    %v560 = vpop.permute.xlu0 %559
    %v562 = vadd.f32 %v552, %v560
    %v563 = vtanh.pop %v562
    %565 = vrot.lane.b32.xlu0 %v563, 64
    %v566 = vpop.permute.xlu0 %565
    %v568 = vmul.f32 %v550, %v566
    %570 = vrot.lane.b32.xlu0 %v568, 32
    %v571 = vpop.permute.xlu0 %570
    %v573 = vmul.f32 %v550, %v571
    %v574 = vsub.f32 1.0, %v550
    %576 = vrot.lane.b32.xlu0 %v544, 64
    %v577 = vpop.permute.xlu0 %576
    %v579 = vmul.f32 %v574, %v577
    %v580 = vadd.f32 %v573, %v579
    %v581 = vpack.c.bf16 %v580, %v580
    %583 = vrot.lane.b32.xlu0 %v581, 32
    %v584 = vpop.permute.xlu0 %583
    %v586 = vsel %vm159, %v584, 0
    %588 = vmatprep.subr.bf16.mxu0 %v282
    %589 = vmatpush1.bf16.msra.mxu0 %v281
    %590 = vmatprep.subr.bf16.mxu0 %v284
    %591 = vmatpush1.bf16.msra.mxu0 %v283
    %592 = vmatprep.subr.bf16.mxu0 0
    %593 = vmatpush1.bf16.msra.mxu0 0
    %594 = vmatprep.subr.bf16.mxu0 0
    %595 = vmatpush1.bf16.msra.mxu0 0
    %596 = vmatprep.subr.bf16.mxu0 0
    %597 = vmatpush1.bf16.msra.mxu0 0
    %598 = vmatprep.subr.bf16.mxu0 0
    %599 = vmatpush1.bf16.msra.mxu0 0
    %600 = vmatprep.subr.bf16.mxu0 0
    %601 = vmatpush1.bf16.msra.mxu0 0
    %602 = vmatprep.subr.bf16.mxu0 0
    %603 = vmatpush1.bf16.msra.mxu0 0
    %604 = vmatprep.subr.bf16.mxu0 0
    %605 = vmatpush1.bf16.msra.mxu0 0
    %606 = vmatprep.subr.bf16.mxu0 0
    %607 = vmatpush1.bf16.msra.mxu0 0
    %608 = vmatprep.subr.bf16.mxu0 0
    %609 = vmatpush1.bf16.msra.mxu0 0
    %610 = vmatprep.subr.bf16.mxu0 0
    %611 = vmatpush1.bf16.msra.mxu0 0
    %612 = vmatprep.subr.bf16.mxu0 0
    %613 = vmatpush1.bf16.msra.mxu0 0
    %614 = vmatprep.subr.bf16.mxu0 0
    %615 = vmatpush1.bf16.msra.mxu0 0
    %616 = vmatprep.subr.bf16.mxu0 0
    %617 = vmatpush1.bf16.msra.mxu0 0
    %618 = vmatprep.subr.bf16.mxu0 0
    %619 = vmatpush1.bf16.msra.mxu0 0
    %620 = vmatprep.mubr.bf16.mxu0 0
    %621 = vmatmul.mubr.bf16.gmra.mrb[0].mxu0 %v586
    %v622 = vpop.f32.mrb[0].mxu0
    %v623 = vadd.f32 0.0, %v622
    %v624 = vpop.f32.mrb[0].mxu0
    %v625 = vadd.f32 0.0, %v624
    %v626 = vpop.f32.mrb[0].mxu0
    %v627 = vpop.f32.mrb[0].mxu0
    %628 = vdwg.mxu0
    %629 = vmatprep.subr.bf16.mxu0 0
    %630 = vmatpush1.bf16.msra.mxu0 %v347
    %631 = vmatprep.subr.bf16.mxu0 0
    %632 = vmatpush1.bf16.msra.mxu0 %v348
    %633 = vmatprep.subr.bf16.mxu0 0
    %634 = vmatpush1.bf16.msra.mxu0 0
    %635 = vmatprep.subr.bf16.mxu0 0
    %636 = vmatpush1.bf16.msra.mxu0 0
    %637 = vmatprep.subr.bf16.mxu0 0
    %638 = vmatpush1.bf16.msra.mxu0 0
    %639 = vmatprep.subr.bf16.mxu0 0
    %640 = vmatpush1.bf16.msra.mxu0 0
    %641 = vmatprep.subr.bf16.mxu0 0
    %642 = vmatpush1.bf16.msra.mxu0 0
    %643 = vmatprep.subr.bf16.mxu0 0
    %644 = vmatpush1.bf16.msra.mxu0 0
    %645 = vmatprep.subr.bf16.mxu0 0
    %646 = vmatpush1.bf16.msra.mxu0 0
    %647 = vmatprep.subr.bf16.mxu0 0
    %648 = vmatpush1.bf16.msra.mxu0 0
    %649 = vmatprep.subr.bf16.mxu0 0
    %650 = vmatpush1.bf16.msra.mxu0 0
    %651 = vmatprep.subr.bf16.mxu0 0
    %652 = vmatpush1.bf16.msra.mxu0 0
    %653 = vmatprep.subr.bf16.mxu0 0
    %654 = vmatpush1.bf16.msra.mxu0 0
    %655 = vmatprep.subr.bf16.mxu0 0
    %656 = vmatpush1.bf16.msra.mxu0 0
    %657 = vmatprep.subr.bf16.mxu0 0
    %658 = vmatpush1.bf16.msra.mxu0 0
    %659 = vmatprep.subr.bf16.mxu0 0
    %660 = vmatpush1.bf16.msra.mxu0 0
    %661 = vmatprep.mubr.bf16.mxu0 0
    %662 = vmatmul.mubr.bf16.gmra.mrb[0].mxu0 %v586
    %v663 = vpop.f32.mrb[0].mxu0
    %v664 = vadd.f32 %v337, %v663
    %v665 = vpop.f32.mrb[0].mxu0
    %v666 = vpop.f32.mrb[0].mxu0
    %v667 = vpop.f32.mrb[0].mxu0
    %668 = vdwg.mxu0
    %669 = vmax.xlane.f32.xlu0 %v664
    %v670 = vpop.xlane.xlu0 %669
    %vm671 = vcmp.eq.f32.partialorder %v664, %v670
    %v672 = vsel %vm671, %v228, 128
    %v673 = vand.u32 %v672, 65535
    %v674 = vshra.s32 %v672, 16
    %v675 = vcvt.s32.f32 %v673
    %v676 = vcvt.s32.f32 %v674
    %677 = vmin.xlane.f32.xlu0 %v676
    %v678 = vpop.xlane.xlu0 %677
    %vm679 = vcmp.eq.f32.partialorder %v676, %v678
    %v680 = vsel %vm679, %v675, inf
    %681 = vmin.xlane.f32.xlu0 %v680
    %v682 = vpop.xlane.xlu0 %681
    %v683 = vcvt.f32.s32 %v682
    %v684 = vcvt.f32.s32 %v678
    %v685 = vshll.u32 %v684, 16
    %v686 = vadd.s32 %v685, %v683
    %v687 = vadd.s32 %v686, 1
    %vm688 = vcmp.eq.s32.totalorder %v687, 1
    %v689 = vsel %vm688, 1, 0
    %vm690 = vcmp.eq.s32.totalorder %v689, 1
    %v691 = vsel %vm690, %v416, 0.0
    %v692 = vsel %vm690, %v420, 0.0
    %vm693 = vcmp.eq.s32.totalorder %v687, 2
    %v694 = vsel %vm693, 1, 0
    %vm695 = vcmp.eq.s32.totalorder %v694, 1
    %v696 = vsel %vm695, %v429, %v691
    %v697 = vsel %vm695, %v433, %v692
    %vm698 = vcmp.eq.s32.totalorder %v687, 3
    %v699 = vsel %vm698, 1, 0
    %vm700 = vcmp.eq.s32.totalorder %v699, 1
    %v701 = vsel %vm700, %v442, %v696
    %v702 = vsel %vm700, %v446, %v697
    %vm703 = vcmp.eq.s32.totalorder %v687, 4
    %v704 = vsel %vm703, 1, 0
    %vm705 = vcmp.eq.s32.totalorder %v704, 1
    %v706 = vsel %vm705, %v455, %v701
    %v707 = vsel %vm705, %v459, %v702
    %vm708 = vcmp.eq.s32.totalorder %v687, 5
    %v709 = vsel %vm708, 1, 0
    %vm710 = vcmp.eq.s32.totalorder %v709, 1
    %v711 = vsel %vm710, %v468, %v706
    %v712 = vsel %vm710, %v472, %v707
    %vm713 = vcmp.eq.s32.totalorder %v687, 6
    %v714 = vsel %vm713, 1, 0
    %vm715 = vcmp.eq.s32.totalorder %v714, 1
    %v716 = vsel %vm715, %v481, %v711
    %v717 = vsel %vm715, %v485, %v712
    %vm718 = vcmp.eq.s32.totalorder %v687, 7
    %v719 = vsel %vm718, 1, 0
    %vm720 = vcmp.eq.s32.totalorder %v719, 1
    %v721 = vsel %vm720, %v494, %v716
    %v722 = vsel %vm720, %v498, %v717
    %vm723 = vcmp.eq.s32.totalorder %v687, 8
    %v724 = vsel %vm723, 1, 0
    %vm725 = vcmp.eq.s32.totalorder %v724, 1
    %v726 = vsel %vm725, %v507, %v721
    %v727 = vsel %vm725, %v511, %v722
    %vm728 = vcmp.eq.s32.totalorder %v687, 9
    %v729 = vsel %vm728, 1, 0
    %vm730 = vcmp.eq.s32.totalorder %v729, 1
    %v731 = vsel %vm730, %v520, %v726
    %v732 = vsel %vm730, %v524, %v727
    %vm733 = vcmp.eq.s32.totalorder %v687, 10
    %v734 = vsel %vm733, 1, 0
    %vm735 = vcmp.eq.s32.totalorder %v734, 1
    %v736 = vsel %vm735, %v533, %v731
    %v737 = vsel %vm735, %v537, %v732
    %738 = vst [vmem:[#allocation11 + $0x8] sm:$0xff] %v664
    %v739 = vadd.f32 %v211, %v623
    %v740 = vadd.f32 %v213, %v625
    %v741 = vadd.f32 %v739, %v736
    %v742 = vadd.f32 %v740, %v737
    %v743 = vxor.u32 %v741, 2147483648
    %v744 = vmul.f32 %v743, 1.442695
    %v745 = vpow.pop %v744
    %v746 = vadd.f32 %v745, 1.0
    %v747 = vrcp.pop %v746
    %v748 = vmul.f32 1.0, %v747
    %v749 = vtanh.pop %v742
    %v750 = vmul.f32 %v748, %v749
    %752 = vrot.lane.b32.xlu0 %v562, 32
    %v753 = vpop.permute.xlu0 %752
    %v755 = vmul.f32 %v748, %v753
    %757 = vrot.lane.b32.xlu0 %v755, 96
    %v758 = vpop.permute.xlu0 %757
    %v760 = vadd.f32 %v750, %v758
    %v761 = vtanh.pop %v760
    %763 = vrot.lane.b32.xlu0 %v761, 64
    %v764 = vpop.permute.xlu0 %763
    %v766 = vmul.f32 %v748, %v764
    %768 = vrot.lane.b32.xlu0 %v766, 32
    %v769 = vpop.permute.xlu0 %768
    %v771 = vmul.f32 %v748, %v769
    %v772 = vsub.f32 1.0, %v748
    %774 = vrot.lane.b32.xlu0 %v742, 64
    %v775 = vpop.permute.xlu0 %774
    %v777 = vmul.f32 %v772, %v775
    %v778 = vadd.f32 %v771, %v777
    %v779 = vpack.c.bf16 %v778, %v778
    %781 = vrot.lane.b32.xlu0 %v779, 32
    %v782 = vpop.permute.xlu0 %781
    %v784 = vsel %vm159, %v782, 0
    %786 = vmatprep.subr.bf16.mxu0 %v282
    %787 = vmatpush1.bf16.msra.mxu0 %v281
    %788 = vmatprep.subr.bf16.mxu0 %v284
    %789 = vmatpush1.bf16.msra.mxu0 %v283
    %790 = vmatprep.subr.bf16.mxu0 0
    %791 = vmatpush1.bf16.msra.mxu0 0
    %792 = vmatprep.subr.bf16.mxu0 0
    %793 = vmatpush1.bf16.msra.mxu0 0
    %794 = vmatprep.subr.bf16.mxu0 0
    %795 = vmatpush1.bf16.msra.mxu0 0
    %796 = vmatprep.subr.bf16.mxu0 0
    %797 = vmatpush1.bf16.msra.mxu0 0
    %798 = vmatprep.subr.bf16.mxu0 0
    %799 = vmatpush1.bf16.msra.mxu0 0
    %800 = vmatprep.subr.bf16.mxu0 0
    %801 = vmatpush1.bf16.msra.mxu0 0
    %802 = vmatprep.subr.bf16.mxu0 0
    %803 = vmatpush1.bf16.msra.mxu0 0
    %804 = vmatprep.subr.bf16.mxu0 0
    %805 = vmatpush1.bf16.msra.mxu0 0
    %806 = vmatprep.subr.bf16.mxu0 0
    %807 = vmatpush1.bf16.msra.mxu0 0
    %808 = vmatprep.subr.bf16.mxu0 0
    %809 = vmatpush1.bf16.msra.mxu0 0
    %810 = vmatprep.subr.bf16.mxu0 0
    %811 = vmatpush1.bf16.msra.mxu0 0
    %812 = vmatprep.subr.bf16.mxu0 0
    %813 = vmatpush1.bf16.msra.mxu0 0
    %814 = vmatprep.subr.bf16.mxu0 0
    %815 = vmatpush1.bf16.msra.mxu0 0
    %816 = vmatprep.subr.bf16.mxu0 0
    %817 = vmatpush1.bf16.msra.mxu0 0
    %818 = vmatprep.mubr.bf16.mxu0 0
    %819 = vmatmul.mubr.bf16.gmra.mrb[0].mxu0 %v784
    %v820 = vpop.f32.mrb[0].mxu0
    %v821 = vadd.f32 0.0, %v820
    %v822 = vpop.f32.mrb[0].mxu0
    %v823 = vadd.f32 0.0, %v822
    %v824 = vpop.f32.mrb[0].mxu0
    %v825 = vpop.f32.mrb[0].mxu0
    %826 = vdwg.mxu0
    %827 = vmatprep.subr.bf16.mxu0 0
    %828 = vmatpush1.bf16.msra.mxu0 %v347
    %829 = vmatprep.subr.bf16.mxu0 0
    %830 = vmatpush1.bf16.msra.mxu0 %v348
    %831 = vmatprep.subr.bf16.mxu0 0
    %832 = vmatpush1.bf16.msra.mxu0 0
    %833 = vmatprep.subr.bf16.mxu0 0
    %834 = vmatpush1.bf16.msra.mxu0 0
    %835 = vmatprep.subr.bf16.mxu0 0
    %836 = vmatpush1.bf16.msra.mxu0 0
    %837 = vmatprep.subr.bf16.mxu0 0
    %838 = vmatpush1.bf16.msra.mxu0 0
    %839 = vmatprep.subr.bf16.mxu0 0
    %840 = vmatpush1.bf16.msra.mxu0 0
    %841 = vmatprep.subr.bf16.mxu0 0
    %842 = vmatpush1.bf16.msra.mxu0 0
    %843 = vmatprep.subr.bf16.mxu0 0
    %844 = vmatpush1.bf16.msra.mxu0 0
    %845 = vmatprep.subr.bf16.mxu0 0
    %846 = vmatpush1.bf16.msra.mxu0 0
    %847 = vmatprep.subr.bf16.mxu0 0
    %848 = vmatpush1.bf16.msra.mxu0 0
    %849 = vmatprep.subr.bf16.mxu0 0
    %850 = vmatpush1.bf16.msra.mxu0 0
    %851 = vmatprep.subr.bf16.mxu0 0
    %852 = vmatpush1.bf16.msra.mxu0 0
    %853 = vmatprep.subr.bf16.mxu0 0
    %854 = vmatpush1.bf16.msra.mxu0 0
    %855 = vmatprep.subr.bf16.mxu0 0
    %856 = vmatpush1.bf16.msra.mxu0 0
    %857 = vmatprep.subr.bf16.mxu0 0
    %858 = vmatpush1.bf16.msra.mxu0 0
    %859 = vmatprep.mubr.bf16.mxu0 0
    %860 = vmatmul.mubr.bf16.gmra.mrb[0].mxu0 %v784
    %v861 = vpop.f32.mrb[0].mxu0
    %v862 = vadd.f32 %v337, %v861
    %v863 = vpop.f32.mrb[0].mxu0
    %v864 = vpop.f32.mrb[0].mxu0
    %v865 = vpop.f32.mrb[0].mxu0
    %866 = vdwg.mxu0
    %867 = vmax.xlane.f32.xlu0 %v862
    %v868 = vpop.xlane.xlu0 %867
    %vm869 = vcmp.eq.f32.partialorder %v862, %v868
    %v870 = vsel %vm869, %v228, 128
    %v871 = vand.u32 %v870, 65535
    %v872 = vshra.s32 %v870, 16
    %v873 = vcvt.s32.f32 %v871
    %v874 = vcvt.s32.f32 %v872
    %875 = vmin.xlane.f32.xlu0 %v874
    %v876 = vpop.xlane.xlu0 %875
    %vm877 = vcmp.eq.f32.partialorder %v874, %v876
    %v878 = vsel %vm877, %v873, inf
    %879 = vmin.xlane.f32.xlu0 %v878
    %v880 = vpop.xlane.xlu0 %879
    %v881 = vcvt.f32.s32 %v880
    %v882 = vcvt.f32.s32 %v876
    %v883 = vshll.u32 %v882, 16
    %v884 = vadd.s32 %v883, %v881
    %v885 = vadd.s32 %v884, 1
    %vm886 = vcmp.eq.s32.totalorder %v885, 1
    %v887 = vsel %vm886, 1, 0
    %vm888 = vcmp.eq.s32.totalorder %v887, 1
    %v889 = vsel %vm888, %v416, 0.0
    %v890 = vsel %vm888, %v420, 0.0
    %vm891 = vcmp.eq.s32.totalorder %v885, 2
    %v892 = vsel %vm891, 1, 0
    %vm893 = vcmp.eq.s32.totalorder %v892, 1
    %v894 = vsel %vm893, %v429, %v889
    %v895 = vsel %vm893, %v433, %v890
    %vm896 = vcmp.eq.s32.totalorder %v885, 3
    %v897 = vsel %vm896, 1, 0
    %vm898 = vcmp.eq.s32.totalorder %v897, 1
    %v899 = vsel %vm898, %v442, %v894
    %v900 = vsel %vm898, %v446, %v895
    %vm901 = vcmp.eq.s32.totalorder %v885, 4
    %v902 = vsel %vm901, 1, 0
    %vm903 = vcmp.eq.s32.totalorder %v902, 1
    %v904 = vsel %vm903, %v455, %v899
    %v905 = vsel %vm903, %v459, %v900
    %vm906 = vcmp.eq.s32.totalorder %v885, 5
    %v907 = vsel %vm906, 1, 0
    %vm908 = vcmp.eq.s32.totalorder %v907, 1
    %v909 = vsel %vm908, %v468, %v904
    %v910 = vsel %vm908, %v472, %v905
    %vm911 = vcmp.eq.s32.totalorder %v885, 6
    %v912 = vsel %vm911, 1, 0
    %vm913 = vcmp.eq.s32.totalorder %v912, 1
    %v914 = vsel %vm913, %v481, %v909
    %v915 = vsel %vm913, %v485, %v910
    %vm916 = vcmp.eq.s32.totalorder %v885, 7
    %v917 = vsel %vm916, 1, 0
    %vm918 = vcmp.eq.s32.totalorder %v917, 1
    %v919 = vsel %vm918, %v494, %v914
    %v920 = vsel %vm918, %v498, %v915
    %vm921 = vcmp.eq.s32.totalorder %v885, 8
    %v922 = vsel %vm921, 1, 0
    %vm923 = vcmp.eq.s32.totalorder %v922, 1
    %v924 = vsel %vm923, %v507, %v919
    %v925 = vsel %vm923, %v511, %v920
    %vm926 = vcmp.eq.s32.totalorder %v885, 9
    %v927 = vsel %vm926, 1, 0
    %vm928 = vcmp.eq.s32.totalorder %v927, 1
    %v929 = vsel %vm928, %v520, %v924
    %v930 = vsel %vm928, %v524, %v925
    %vm931 = vcmp.eq.s32.totalorder %v885, 10
    %v932 = vsel %vm931, 1, 0
    %vm933 = vcmp.eq.s32.totalorder %v932, 1
    %v934 = vsel %vm933, %v533, %v929
    %v935 = vsel %vm933, %v537, %v930
    %936 = vst [vmem:[#allocation11 + $0x10] sm:$0xff] %v862
    %v937 = vadd.f32 %v215, %v821
    %v938 = vadd.f32 %v217, %v823
    %v939 = vadd.f32 %v937, %v934
    %v940 = vadd.f32 %v938, %v935
    %v941 = vxor.u32 %v939, 2147483648
    %v942 = vmul.f32 %v941, 1.442695
    %v943 = vpow.pop %v942
    %v944 = vadd.f32 %v943, 1.0
    %v945 = vrcp.pop %v944
    %v946 = vmul.f32 1.0, %v945
    %v947 = vtanh.pop %v940
    %v948 = vmul.f32 %v946, %v947
    %950 = vrot.lane.b32.xlu0 %v760, 32
    %v951 = vpop.permute.xlu0 %950
    %v953 = vmul.f32 %v946, %v951
    %955 = vrot.lane.b32.xlu0 %v953, 96
    %v956 = vpop.permute.xlu0 %955
    %v958 = vadd.f32 %v948, %v956
    %v959 = vtanh.pop %v958
    %961 = vrot.lane.b32.xlu0 %v959, 64
    %v962 = vpop.permute.xlu0 %961
    %v964 = vmul.f32 %v946, %v962
    %966 = vrot.lane.b32.xlu0 %v964, 32
    %v967 = vpop.permute.xlu0 %966
    %v969 = vmul.f32 %v946, %v967
    %v970 = vsub.f32 1.0, %v946
    %972 = vrot.lane.b32.xlu0 %v940, 64
    %v973 = vpop.permute.xlu0 %972
    %v975 = vmul.f32 %v970, %v973
    %v976 = vadd.f32 %v969, %v975
    %v977 = vpack.c.bf16 %v976, %v976
    %979 = vrot.lane.b32.xlu0 %v977, 32
    %v980 = vpop.permute.xlu0 %979
    %v982 = vsel %vm159, %v980, 0
    %984 = vmatprep.subr.bf16.mxu0 0
    %985 = vmatpush1.bf16.msra.mxu0 %v347
    %986 = vmatprep.subr.bf16.mxu0 0
    %987 = vmatpush1.bf16.msra.mxu0 %v348
    %988 = vmatprep.subr.bf16.mxu0 0
    %989 = vmatpush1.bf16.msra.mxu0 0
    %990 = vmatprep.subr.bf16.mxu0 0
    %991 = vmatpush1.bf16.msra.mxu0 0
    %992 = vmatprep.subr.bf16.mxu0 0
    %993 = vmatpush1.bf16.msra.mxu0 0
    %994 = vmatprep.subr.bf16.mxu0 0
    %995 = vmatpush1.bf16.msra.mxu0 0
    %996 = vmatprep.subr.bf16.mxu0 0
    %997 = vmatpush1.bf16.msra.mxu0 0
    %998 = vmatprep.subr.bf16.mxu0 0
    %999 = vmatpush1.bf16.msra.mxu0 0
    %1000 = vmatprep.subr.bf16.mxu0 0
    %1001 = vmatpush1.bf16.msra.mxu0 0
    %1002 = vmatprep.subr.bf16.mxu0 0
    %1003 = vmatpush1.bf16.msra.mxu0 0
    %1004 = vmatprep.subr.bf16.mxu0 0
    %1005 = vmatpush1.bf16.msra.mxu0 0
    %1006 = vmatprep.subr.bf16.mxu0 0
    %1007 = vmatpush1.bf16.msra.mxu0 0
    %1008 = vmatprep.subr.bf16.mxu0 0
    %1009 = vmatpush1.bf16.msra.mxu0 0
    %1010 = vmatprep.subr.bf16.mxu0 0
    %1011 = vmatpush1.bf16.msra.mxu0 0
    %1012 = vmatprep.subr.bf16.mxu0 0
    %1013 = vmatpush1.bf16.msra.mxu0 0
    %1014 = vmatprep.subr.bf16.mxu0 0
    %1015 = vmatpush1.bf16.msra.mxu0 0
    %1016 = vmatprep.mubr.bf16.mxu0 0
    %1017 = vmatmul.mubr.bf16.gmra.mrb[0].mxu0 %v982
    %v1018 = vpop.f32.mrb[0].mxu0
    %v1019 = vadd.f32 %v337, %v1018
    %v1020 = vpop.f32.mrb[0].mxu0
    %v1021 = vpop.f32.mrb[0].mxu0
    %v1022 = vpop.f32.mrb[0].mxu0
    %1023 = vdwg.mxu0
    %1024 = vst [vmem:[#allocation11 + $0x18] sm:$0xff] %v1019
    // Predicated region
    $region50: #{tpu_custom_call.1} parent=1 // pred_check
      _
    $region51: #{tpu_custom_call.1} parent=1 // pred_check_branch
      %1026 = sbr.rel (0) target = $region53
    $region52: #{tpu_custom_call.1} parent=1 // pred_region
      %s1028 = ssub.s32 512, 512
      %1029 = vsyncadd [#allocation4], %s1028
      %s1030 = sshll.u32 [#allocation11], 4
      %s1031 = int_to_ptr.vmem [resolvable:$true] %s1030
      %1036 = dma.vmem_to_hbm [thread:$0]  %s1031, 512, %s7, [#allocation4], 128, 128, 8
    $region53: #{tpu_custom_call.1} parent=1 // pred_fallthru
      _
    // Predicated region
    $region54: #{tpu_custom_call.1} parent=1 // pred_check
      _
    $region55: #{tpu_custom_call.1} parent=1 // pred_check_branch
      %1038 = sbr.rel (0) target = $region57
    $region56: #{tpu_custom_call.1} parent=1 // pred_region
      %1039 = dma.done [#allocation4], 512
    $region57: #{tpu_custom_call.1} parent=1 // pred_fallthru
      _
    %1040 = vsyncpa [#allocation3], 1
    %1041 = vsyncpa [#allocation6], 1
    %1042 = vsyncpa [#allocation9], 1
    %1043 = vsyncpa [#allocation4], 1

</llo_original>
